<compile_context>
chip_gen: v7x
topology: tpu7x:2x2x1
jax: 0.10.0
libtpu: 0.0.40
codegen_flags: <defaults>
</compile_context>

<pallas_src>
import functools

import jax
import jax.numpy as jnp
from jax.experimental import pallas as pl
from jax.experimental.pallas import tpu as pltpu


def _round_up(x, m):
    return (x + m - 1) // m * m


def mlp_kernel(x_ref, w1_ref, b1_ref, w2_ref, b2_ref, o_ref):
    # Hidden layer: bf16 MXU inputs, f32 accumulation (astype is a no-op if
    # the caller already supplies bf16 activations).
    x = x_ref[...].astype(jnp.bfloat16)
    h = jnp.dot(x, w1_ref[...], preferred_element_type=jnp.float32)
    h = jnp.maximum(h + b1_ref[...], 0.0)            # bias + ReLU in f32 (VPU)
    # Output layer: N = num_labels (small); MXU shape is not the bottleneck
    # here (kernel is DMA / launch-overhead bound), so no lane padding.
    z = jnp.dot(h.astype(jnp.bfloat16), w2_ref[...],
                preferred_element_type=jnp.float32)
    o_ref[...] = jax.nn.sigmoid(z + b2_ref[...])     # f32 probabilities


def prepare_params(w1, b1, w2, b2):
    """One-time parameter prep (do this at init, NOT per forward call).

    w1:(D,H), b1:(H,), w2:(H,L), b2:(L,)  ->  bf16 weights, (1,N) f32 biases.
    """
    w1_b = w1.astype(jnp.bfloat16)
    w2_b = w2.astype(jnp.bfloat16)
    b1_r = b1.reshape(1, -1).astype(jnp.float32)
    b2_r = b2.reshape(1, -1).astype(jnp.float32)
    return w1_b, b1_r, w2_b, b2_r


def _auto_tile_b(B):
    # One fat tile for small batches (grid of 1 on single-TC v5e/v6e); cap at
    # 1024 rows/step for larger batches (well under default scoped VMEM on
    # every generation).  Must be a multiple of 8 (sublane constraint).
    return min(_round_up(max(B, 8), 8), 1024)


@functools.partial(jax.jit, static_argnames=("tile_b",))
def mlp_forward(x, w1_b, b1_r, w2_b, b2_r, *, tile_b):
    """x:(B,D) f32 or bf16, prepared params -> (B,L) f32 probabilities."""
    B, D = x.shape
    H = w1_b.shape[1]
    L = w2_b.shape[1]
    BP = _round_up(B, tile_b)
    x_p = x if BP == B else jnp.pad(x, ((0, BP - B), (0, 0)))

    grid = (BP // tile_b,)
    out = pl.pallas_call(
        mlp_kernel,
        out_shape=jax.ShapeDtypeStruct((BP, L), jnp.float32),
        grid_spec=pltpu.PrefetchScalarGridSpec(
            num_scalar_prefetch=0,
            grid=grid,
            in_specs=[
                pl.BlockSpec((tile_b, D), lambda i: (i, 0)),  # x: tiled batch
                pl.BlockSpec((D, H), lambda i: (0, 0)),       # W1: VMEM-resident
                pl.BlockSpec((1, H), lambda i: (0, 0)),       # b1: VMEM-resident
                pl.BlockSpec((H, L), lambda i: (0, 0)),       # W2: VMEM-resident
                pl.BlockSpec((1, L), lambda i: (0, 0)),       # b2: VMEM-resident
            ],
            out_specs=pl.BlockSpec((tile_b, L), lambda i: (i, 0)),
        ),
        compiler_params=pltpu.CompilerParams(
            # Batch tiles are independent.  On v7x a grid > 1 may shard across
            # the 2 TensorCores; on single-TC v5e/v6e this is a no-op and the
            # auto tile_b collapses the grid to 1 step for small batches.
            # TODO(synk): verify v7x core split (pltpu.CORE_PARALLEL /
            # pl.core_map) before relying on a 2-way grid there.
            dimension_semantics=("parallel",),
        ),
    )(x_p, w1_b, b1_r, w2_b, b2_r)
    return out if BP == B else out[:B]


if __name__ == "__main__":
    # Synthetic stand-ins for the .npy-derived dims:
    #   input_dim  = embeddings.shape[1] -> 384
    #   hidden_dim = 256
    #   num_labels = labels.shape[1]     -> 16
    B, D, H, L = 512, 384, 256, 16

    key = jax.random.PRNGKey(0)
    kx, kw1, kb1, kw2, kb2 = jax.random.split(key, 5)

    x = jax.random.normal(kx, (B, D), dtype=jnp.float32)
    # Deterministic init (uniform +/- 1/sqrt(fan_in), like torch.nn.Linear).
    w1 = jax.random.uniform(kw1, (D, H), jnp.float32, -1.0, 1.0) / jnp.sqrt(D)
    b1 = jax.random.uniform(kb1, (H,), jnp.float32, -1.0, 1.0) / jnp.sqrt(D)
    w2 = jax.random.uniform(kw2, (H, L), jnp.float32, -1.0, 1.0) / jnp.sqrt(H)
    b2 = jax.random.uniform(kb2, (L,), jnp.float32, -1.0, 1.0) / jnp.sqrt(H)

    # One-time prep (hoisted out of the per-call path).
    params = prepare_params(w1, b1, w2, b2)
    params = jax.tree_util.tree_map(jax.block_until_ready, params)

    tile_b = _auto_tile_b(B)   # -> 512: single fat tile, grid of 1
    out = mlp_forward(x, *params, tile_b=tile_b)
    jax.block_until_ready(out)
    assert out.shape == (B, L)

    # Reference with the same bf16 matmul-input casts (f32 accumulation).
    h_ref = jnp.maximum(
        jnp.dot(x.astype(jnp.bfloat16), w1.astype(jnp.bfloat16),
                preferred_element_type=jnp.float32) + b1, 0.0)
    ref = jax.nn.sigmoid(
        jnp.dot(h_ref.astype(jnp.bfloat16), w2.astype(jnp.bfloat16),
                preferred_element_type=jnp.float32) + b2)
    assert jnp.allclose(out, ref, atol=1e-4, rtol=1e-4)

    # Sanity vs. pure-f32 torch math (looser tol due to bf16 matmul inputs).
    ref_f32 = jax.nn.sigmoid(jnp.maximum(x @ w1 + b1, 0.0) @ w2 + b2)
    assert jnp.allclose(out, ref_f32, atol=3e-2)

    # Also exercise a non-trivial grid (batch not divisible by tile) to check
    # the padded-batch path.
    out_small = mlp_forward(x[:300], *params, tile_b=256)
    jax.block_until_ready(out_small)
    assert out_small.shape == (300, L)
    assert jnp.allclose(out_small, ref[:300], atol=1e-4, rtol=1e-4)

    print("KERNEL_OK")
</pallas_src>

<mosaic_0001>
module attributes {stable_mosaic.version = 11 : i64} {
  func.func @mlp_kernel(%arg0: i32, %arg1: memref<512x384xf32, #tpu.memory_space<vmem>>, %arg2: memref<384x256xbf16, #tpu.memory_space<vmem>>, %arg3: memref<1x256xf32, #tpu.memory_space<vmem>>, %arg4: memref<256x16xbf16, #tpu.memory_space<vmem>>, %arg5: memref<1x16xf32, #tpu.memory_space<vmem>>, %arg6: memref<512x16xf32, #tpu.memory_space<vmem>>) attributes {dimension_semantics = [#tpu.dimension_semantics<parallel>], iteration_bounds = array<i64: 1>, scalar_prefetch = 0 : i64, scratch_operands = 0 : i64, tpu.core_type = #tpu.core_type<tc>, window_params = [{transform_indices = @transform_0, window_bounds = array<i64: 512, 384>}, {pipeline_mode = #tpu.pipeline_mode<synchronous>, transform_indices = @transform_1, window_bounds = array<i64: 384, 256>}, {pipeline_mode = #tpu.pipeline_mode<synchronous>, transform_indices = @transform_2, window_bounds = array<i64: 1, 256>}, {pipeline_mode = #tpu.pipeline_mode<synchronous>, transform_indices = @transform_3, window_bounds = array<i64: 256, 16>}, {pipeline_mode = #tpu.pipeline_mode<synchronous>, transform_indices = @transform_4, window_bounds = array<i64: 1, 16>}, {transform_indices = @transform_5, window_bounds = array<i64: 512, 16>}]} {
    %c0 = arith.constant 0 : index
    %c0_0 = arith.constant 0 : index
    %0 = vector.load %arg1[%c0, %c0_0] : memref<512x384xf32, #tpu.memory_space<vmem>>, vector<512x384xf32>
    %1 = arith.truncf %0 : vector<512x384xf32> to vector<512x384xbf16>
    %c0_1 = arith.constant 0 : index
    %c0_2 = arith.constant 0 : index
    %2 = vector.load %arg2[%c0_1, %c0_2] : memref<384x256xbf16, #tpu.memory_space<vmem>>, vector<384x256xbf16>
    %cst = arith.constant dense<0.000000e+00> : vector<512x256xf32>
    %3 = tpu.matmul %1, %2, %cst {dimension_numbers = #tpu.dot_dimension_numbers<[1], [0], [0], [1], [0, 0, 1, 1], [], []>} : vector<512x384xbf16>, vector<384x256xbf16>, vector<512x256xf32> -> vector<512x256xf32>
    %c0_3 = arith.constant 0 : index
    %c0_4 = arith.constant 0 : index
    %4 = vector.load %arg3[%c0_3, %c0_4] : memref<1x256xf32, #tpu.memory_space<vmem>>, vector<1x256xf32>
    %5 = vector.broadcast %4 : vector<1x256xf32> to vector<512x256xf32>
    %6 = arith.addf %3, %5 : vector<512x256xf32>
    %cst_5 = arith.constant 0.000000e+00 : f32
    %7 = vector.broadcast %cst_5 : f32 to vector<512x256xf32>
    %8 = arith.maximumf %6, %7 : vector<512x256xf32>
    %9 = arith.truncf %8 : vector<512x256xf32> to vector<512x256xbf16>
    %c0_6 = arith.constant 0 : index
    %c0_7 = arith.constant 0 : index
    %10 = vector.load %arg4[%c0_6, %c0_7] : memref<256x16xbf16, #tpu.memory_space<vmem>>, vector<256x16xbf16>
    %cst_8 = arith.constant dense<0.000000e+00> : vector<512x16xf32>
    %11 = tpu.matmul %9, %10, %cst_8 {dimension_numbers = #tpu.dot_dimension_numbers<[1], [0], [0], [1], [0, 0, 1, 1], [], []>} : vector<512x256xbf16>, vector<256x16xbf16>, vector<512x16xf32> -> vector<512x16xf32>
    %c0_9 = arith.constant 0 : index
    %c0_10 = arith.constant 0 : index
    %12 = vector.load %arg5[%c0_9, %c0_10] : memref<1x16xf32, #tpu.memory_space<vmem>>, vector<1x16xf32>
    %13 = vector.broadcast %12 : vector<1x16xf32> to vector<512x16xf32>
    %14 = arith.addf %11, %13 : vector<512x16xf32>
    %15 = arith.negf %14 : vector<512x16xf32>
    %16 = math.exp %15 : vector<512x16xf32>
    %cst_11 = arith.constant 1.000000e+00 : f32
    %17 = vector.broadcast %cst_11 : f32 to vector<512x16xf32>
    %18 = arith.addf %17, %16 : vector<512x16xf32>
    %19 = arith.divf %17, %18 : vector<512x16xf32>
    %c0_12 = arith.constant 0 : index
    %c0_13 = arith.constant 0 : index
    %20 = vector.load %arg6[%c0_12, %c0_13] : memref<512x16xf32, #tpu.memory_space<vmem>>, vector<512x16xf32>
    tpu.vector_store %arg6[%c0_12, %c0_13], %19 {strides = array<i32>} : memref<512x16xf32, #tpu.memory_space<vmem>>, vector<512x16xf32>,
    return
  }
  func.func @transform_0(%arg0: i32) -> (i32, i32) {
    %c0_i32 = arith.constant 0 : i32
    %c0_i32_0 = arith.constant 0 : i32
    return %arg0, %c0_i32 : i32, i32
  }
  func.func @transform_1(%arg0: i32) -> (i32, i32) {
    %c0_i32 = arith.constant 0 : i32
    %c0_i32_0 = arith.constant 0 : i32
    %c0_i32_1 = arith.constant 0 : i32
    return %c0_i32, %c0_i32_0 : i32, i32
  }
  func.func @transform_2(%arg0: i32) -> (i32, i32) {
    %c0_i32 = arith.constant 0 : i32
    %c0_i32_0 = arith.constant 0 : i32
    %c0_i32_1 = arith.constant 0 : i32
    return %c0_i32, %c0_i32_0 : i32, i32
  }
  func.func @transform_3(%arg0: i32) -> (i32, i32) {
    %c0_i32 = arith.constant 0 : i32
    %c0_i32_0 = arith.constant 0 : i32
    %c0_i32_1 = arith.constant 0 : i32
    return %c0_i32, %c0_i32_0 : i32, i32
  }
  func.func @transform_4(%arg0: i32) -> (i32, i32) {
    %c0_i32 = arith.constant 0 : i32
    %c0_i32_0 = arith.constant 0 : i32
    %c0_i32_1 = arith.constant 0 : i32
    return %c0_i32, %c0_i32_0 : i32, i32
  }
  func.func @transform_5(%arg0: i32) -> (i32, i32) {
    %c0_i32 = arith.constant 0 : i32
    %c0_i32_0 = arith.constant 0 : i32
    return %arg0, %c0_i32 : i32, i32
  }
}

</mosaic_0001>

<llo_original>
// kernel: mlp_forward.1
$region0: #{mlp_forward.1}
  #allocation0 [shape = 'u32[]', space=smem, size = 0x4, offset = 0x4, fixed_abs, tag = 'smem constant byte address 0x4 - core index']
  #allocation1 [shape = 'u32[144,128]{1,0:T(1,128)}', space=vmem, size = 0x12000, scoped, tag = 'internal scratch']
  %s0 = inlined_call_operand.hbm [shape: f32[512,384], index: 0, kind: input, shape index: {}]
  %s1 = inlined_call_operand.hbm [shape: bf16[384,256], index: 1, kind: input, shape index: {}]
  %s2 = inlined_call_operand.vmem [shape: f32[1,256], index: 2, kind: input, shape index: {}]
  %s3 = inlined_call_operand.vmem [shape: bf16[256,16], index: 3, kind: input, shape index: {}]
  %s4 = inlined_call_operand.vmem [shape: f32[1,16], index: 4, kind: input, shape index: {}]
  %s5 = inlined_call_operand.vmem [shape: f32[512,16], index: 5, kind: output, shape index: {}]
  %s6 = sld [smem:[#allocation0]]
  $region38: #{mlp_forward.1} parent=0
    _
  %s8 = ssub.s32 1, %s6
  %s9 = scalar_select 0, %s8, %s6
  $region1: #{mlp_forward.1} parent=0
    #allocation2 [shape = 'u8[786432]{0}', space=vmem, size = 0xc0000, scoped, tag = 'input window, operand 0, single buffered']
    #allocation3 [shape = 's32[1]{0}', space=sflag, size = 0x4, scoped, tag = 'scoped memory for mlp_forward.1']
    #allocation4 [shape = 'u8[196608]{0}', space=vmem, size = 0x30000, scoped, tag = 'input window, operand 1, single buffered']
    #allocation5 [shape = 's32[1]{0}', space=sflag, size = 0x4, scoped, tag = 'scoped memory for mlp_forward.1']
    %10 = vsyncpa [#allocation3], 0
    %11 = vsyncpa [#allocation5], 0
    // Predicated region
    $region2: #{mlp_forward.1} parent=1 // pred_check
      _
    $region3: #{mlp_forward.1} parent=1 // pred_check_branch
      %13 = sbr.rel (0) target = $region5
    $region4: #{mlp_forward.1} parent=1 // pred_region
      %s15 = ssub.s32 24576, 24576
      %16 = vsyncadd [#allocation3], %s15
      %s17 = sshll.u32 [#allocation2], 4
      %s18 = int_to_ptr.vmem [resolvable:$true] %s17
      %23 = dma.hbm_to_vmem [thread:$0]  %s0, 24576, %s18, [#allocation3], 384, 384, 24
    $region5: #{mlp_forward.1} parent=1 // pred_fallthru
      _
    // Predicated region
    $region6: #{mlp_forward.1} parent=1 // pred_check
      _
    $region7: #{mlp_forward.1} parent=1 // pred_check_branch
      %25 = sbr.rel (0) target = $region9
    $region8: #{mlp_forward.1} parent=1 // pred_region
      %s27 = ssub.s32 6144, 6144
      %28 = vsyncadd [#allocation5], %s27
      %s29 = sshll.u32 [#allocation4], 4
      %s30 = int_to_ptr.vmem [resolvable:$true] %s29
      %35 = dma.hbm_to_vmem [thread:$0]  %s1, 6144, %s30, [#allocation5], 128, 128, 8
    $region9: #{mlp_forward.1} parent=1 // pred_fallthru
      _
    // Predicated region
    $region10: #{mlp_forward.1} parent=1 // pred_check
      _
    $region11: #{mlp_forward.1} parent=1 // pred_check_branch
      %37 = sbr.rel (0) target = $region13
    $region12: #{mlp_forward.1} parent=1 // pred_region
      _
    $region13: #{mlp_forward.1} parent=1 // pred_fallthru
      _
    // Predicated region
    $region14: #{mlp_forward.1} parent=1 // pred_check
      _
    $region15: #{mlp_forward.1} parent=1 // pred_check_branch
      %39 = sbr.rel (0) target = $region17
    $region16: #{mlp_forward.1} parent=1 // pred_region
      _
    $region17: #{mlp_forward.1} parent=1 // pred_fallthru
      _
    // Predicated region
    $region18: #{mlp_forward.1} parent=1 // pred_check
      _
    $region19: #{mlp_forward.1} parent=1 // pred_check_branch
      %41 = sbr.rel (0) target = $region21
    $region20: #{mlp_forward.1} parent=1 // pred_region
      _
    $region21: #{mlp_forward.1} parent=1 // pred_fallthru
      _
    // Predicated region
    $region22: #{mlp_forward.1} parent=1 // pred_check
      _
    $region23: #{mlp_forward.1} parent=1 // pred_check_branch
      %43 = sbr.rel (0) target = $region25
    $region24: #{mlp_forward.1} parent=1 // pred_region
      %44 = dma.done [#allocation3], 24576
    $region25: #{mlp_forward.1} parent=1 // pred_fallthru
      _
    // Predicated region
    $region26: #{mlp_forward.1} parent=1 // pred_check
      _
    $region27: #{mlp_forward.1} parent=1 // pred_check_branch
      %46 = sbr.rel (0) target = $region29
    $region28: #{mlp_forward.1} parent=1 // pred_region
      %47 = dma.done [#allocation5], 6144
    $region29: #{mlp_forward.1} parent=1 // pred_fallthru
      _
    %v49 = vld [vmem:[#allocation2] sm:$0xff]
    %v50 = vld [vmem:[#allocation2 + $0x8] sm:$0xff]
    %v51 = vld [vmem:[#allocation2 + $0x10] sm:$0xff]
    %v52 = vld [vmem:[#allocation2 + $0x18] sm:$0xff]
    %v53 = vld [vmem:[#allocation2 + $0x20] sm:$0xff]
    %v54 = vld [vmem:[#allocation2 + $0x28] sm:$0xff]
    %v55 = vld [vmem:[#allocation2 + $0x30] sm:$0xff]
    %v56 = vld [vmem:[#allocation2 + $0x38] sm:$0xff]
    %v57 = vld [vmem:[#allocation2 + $0x40] sm:$0xff]
    %v58 = vld [vmem:[#allocation2 + $0x48] sm:$0xff]
    %v59 = vld [vmem:[#allocation2 + $0x50] sm:$0xff]
    %v60 = vld [vmem:[#allocation2 + $0x58] sm:$0xff]
    %v61 = vld [vmem:[#allocation2 + $0x60] sm:$0xff]
    %v62 = vld [vmem:[#allocation2 + $0x68] sm:$0xff]
    %v63 = vld [vmem:[#allocation2 + $0x70] sm:$0xff]
    %v64 = vld [vmem:[#allocation2 + $0x78] sm:$0xff]
    %v65 = vld [vmem:[#allocation2 + $0x80] sm:$0xff]
    %v66 = vld [vmem:[#allocation2 + $0x88] sm:$0xff]
    %v67 = vld [vmem:[#allocation2 + $0x90] sm:$0xff]
    %v68 = vld [vmem:[#allocation2 + $0x98] sm:$0xff]
    %v69 = vld [vmem:[#allocation2 + $0xa0] sm:$0xff]
    %v70 = vld [vmem:[#allocation2 + $0xa8] sm:$0xff]
    %v71 = vld [vmem:[#allocation2 + $0xb0] sm:$0xff]
    %v72 = vld [vmem:[#allocation2 + $0xb8] sm:$0xff]
    %v73 = vld [vmem:[#allocation2 + $0xc0] sm:$0xff]
    %v74 = vld [vmem:[#allocation2 + $0xc8] sm:$0xff]
    %v75 = vld [vmem:[#allocation2 + $0xd0] sm:$0xff]
    %v76 = vld [vmem:[#allocation2 + $0xd8] sm:$0xff]
    %v77 = vld [vmem:[#allocation2 + $0xe0] sm:$0xff]
    %v78 = vld [vmem:[#allocation2 + $0xe8] sm:$0xff]
    %v79 = vld [vmem:[#allocation2 + $0xf0] sm:$0xff]
    %v80 = vld [vmem:[#allocation2 + $0xf8] sm:$0xff]
    %v81 = vld [vmem:[#allocation2 + $0x100] sm:$0xff]
    %v82 = vld [vmem:[#allocation2 + $0x108] sm:$0xff]
    %v83 = vld [vmem:[#allocation2 + $0x110] sm:$0xff]
    %v84 = vld [vmem:[#allocation2 + $0x118] sm:$0xff]
    %v85 = vld [vmem:[#allocation2 + $0x120] sm:$0xff]
    %v86 = vld [vmem:[#allocation2 + $0x128] sm:$0xff]
    %v87 = vld [vmem:[#allocation2 + $0x130] sm:$0xff]
    %v88 = vld [vmem:[#allocation2 + $0x138] sm:$0xff]
    %v89 = vld [vmem:[#allocation2 + $0x140] sm:$0xff]
    %v90 = vld [vmem:[#allocation2 + $0x148] sm:$0xff]
    %v91 = vld [vmem:[#allocation2 + $0x150] sm:$0xff]
    %v92 = vld [vmem:[#allocation2 + $0x158] sm:$0xff]
    %v93 = vld [vmem:[#allocation2 + $0x160] sm:$0xff]
    %v94 = vld [vmem:[#allocation2 + $0x168] sm:$0xff]
    %v95 = vld [vmem:[#allocation2 + $0x170] sm:$0xff]
    %v96 = vld [vmem:[#allocation2 + $0x178] sm:$0xff]
    %v97 = vld [vmem:[#allocation2 + $0x180] sm:$0xff]
    %v98 = vld [vmem:[#allocation2 + $0x188] sm:$0xff]
    %v99 = vld [vmem:[#allocation2 + $0x190] sm:$0xff]
    %v100 = vld [vmem:[#allocation2 + $0x198] sm:$0xff]
    %v101 = vld [vmem:[#allocation2 + $0x1a0] sm:$0xff]
    %v102 = vld [vmem:[#allocation2 + $0x1a8] sm:$0xff]
    %v103 = vld [vmem:[#allocation2 + $0x1b0] sm:$0xff]
    %v104 = vld [vmem:[#allocation2 + $0x1b8] sm:$0xff]
    %v105 = vld [vmem:[#allocation2 + $0x1c0] sm:$0xff]
    %v106 = vld [vmem:[#allocation2 + $0x1c8] sm:$0xff]
    %v107 = vld [vmem:[#allocation2 + $0x1d0] sm:$0xff]
    %v108 = vld [vmem:[#allocation2 + $0x1d8] sm:$0xff]
    %v109 = vld [vmem:[#allocation2 + $0x1e0] sm:$0xff]
    %v110 = vld [vmem:[#allocation2 + $0x1e8] sm:$0xff]
    %v111 = vld [vmem:[#allocation2 + $0x1f0] sm:$0xff]
    %v112 = vld [vmem:[#allocation2 + $0x1f8] sm:$0xff]
    %v113 = vld [vmem:[#allocation2 + $0x200] sm:$0xff]
    %v114 = vld [vmem:[#allocation2 + $0x208] sm:$0xff]
    %v115 = vld [vmem:[#allocation2 + $0x210] sm:$0xff]
    %v116 = vld [vmem:[#allocation2 + $0x218] sm:$0xff]
    %v117 = vld [vmem:[#allocation2 + $0x220] sm:$0xff]
    %v118 = vld [vmem:[#allocation2 + $0x228] sm:$0xff]
    %v119 = vld [vmem:[#allocation2 + $0x230] sm:$0xff]
    %v120 = vld [vmem:[#allocation2 + $0x238] sm:$0xff]
    %v121 = vld [vmem:[#allocation2 + $0x240] sm:$0xff]
    %v122 = vld [vmem:[#allocation2 + $0x248] sm:$0xff]
    %v123 = vld [vmem:[#allocation2 + $0x250] sm:$0xff]
    %v124 = vld [vmem:[#allocation2 + $0x258] sm:$0xff]
    %v125 = vld [vmem:[#allocation2 + $0x260] sm:$0xff]
    %v126 = vld [vmem:[#allocation2 + $0x268] sm:$0xff]
    %v127 = vld [vmem:[#allocation2 + $0x270] sm:$0xff]
    %v128 = vld [vmem:[#allocation2 + $0x278] sm:$0xff]
    %v129 = vld [vmem:[#allocation2 + $0x280] sm:$0xff]
    %v130 = vld [vmem:[#allocation2 + $0x288] sm:$0xff]
    %v131 = vld [vmem:[#allocation2 + $0x290] sm:$0xff]
    %v132 = vld [vmem:[#allocation2 + $0x298] sm:$0xff]
    %v133 = vld [vmem:[#allocation2 + $0x2a0] sm:$0xff]
    %v134 = vld [vmem:[#allocation2 + $0x2a8] sm:$0xff]
    %v135 = vld [vmem:[#allocation2 + $0x2b0] sm:$0xff]
    %v136 = vld [vmem:[#allocation2 + $0x2b8] sm:$0xff]
    %v137 = vld [vmem:[#allocation2 + $0x2c0] sm:$0xff]
    %v138 = vld [vmem:[#allocation2 + $0x2c8] sm:$0xff]
    %v139 = vld [vmem:[#allocation2 + $0x2d0] sm:$0xff]
    %v140 = vld [vmem:[#allocation2 + $0x2d8] sm:$0xff]
    %v141 = vld [vmem:[#allocation2 + $0x2e0] sm:$0xff]
    %v142 = vld [vmem:[#allocation2 + $0x2e8] sm:$0xff]
    %v143 = vld [vmem:[#allocation2 + $0x2f0] sm:$0xff]
    %v144 = vld [vmem:[#allocation2 + $0x2f8] sm:$0xff]
    %v145 = vld [vmem:[#allocation2 + $0x300] sm:$0xff]
    %v146 = vld [vmem:[#allocation2 + $0x308] sm:$0xff]
    %v147 = vld [vmem:[#allocation2 + $0x310] sm:$0xff]
    %v148 = vld [vmem:[#allocation2 + $0x318] sm:$0xff]
    %v149 = vld [vmem:[#allocation2 + $0x320] sm:$0xff]
    %v150 = vld [vmem:[#allocation2 + $0x328] sm:$0xff]
    %v151 = vld [vmem:[#allocation2 + $0x330] sm:$0xff]
    %v152 = vld [vmem:[#allocation2 + $0x338] sm:$0xff]
    %v153 = vld [vmem:[#allocation2 + $0x340] sm:$0xff]
    %v154 = vld [vmem:[#allocation2 + $0x348] sm:$0xff]
    %v155 = vld [vmem:[#allocation2 + $0x350] sm:$0xff]
    %v156 = vld [vmem:[#allocation2 + $0x358] sm:$0xff]
    %v157 = vld [vmem:[#allocation2 + $0x360] sm:$0xff]
    %v158 = vld [vmem:[#allocation2 + $0x368] sm:$0xff]
    %v159 = vld [vmem:[#allocation2 + $0x370] sm:$0xff]
    %v160 = vld [vmem:[#allocation2 + $0x378] sm:$0xff]
    %v161 = vld [vmem:[#allocation2 + $0x380] sm:$0xff]
    %v162 = vld [vmem:[#allocation2 + $0x388] sm:$0xff]
    %v163 = vld [vmem:[#allocation2 + $0x390] sm:$0xff]
    %v164 = vld [vmem:[#allocation2 + $0x398] sm:$0xff]
    %v165 = vld [vmem:[#allocation2 + $0x3a0] sm:$0xff]
    %v166 = vld [vmem:[#allocation2 + $0x3a8] sm:$0xff]
    %v167 = vld [vmem:[#allocation2 + $0x3b0] sm:$0xff]
    %v168 = vld [vmem:[#allocation2 + $0x3b8] sm:$0xff]
    %v169 = vld [vmem:[#allocation2 + $0x3c0] sm:$0xff]
    %v170 = vld [vmem:[#allocation2 + $0x3c8] sm:$0xff]
    %v171 = vld [vmem:[#allocation2 + $0x3d0] sm:$0xff]
    %v172 = vld [vmem:[#allocation2 + $0x3d8] sm:$0xff]
    %v173 = vld [vmem:[#allocation2 + $0x3e0] sm:$0xff]
    %v174 = vld [vmem:[#allocation2 + $0x3e8] sm:$0xff]
    %v175 = vld [vmem:[#allocation2 + $0x3f0] sm:$0xff]
    %v176 = vld [vmem:[#allocation2 + $0x3f8] sm:$0xff]
    %v177 = vld [vmem:[#allocation2 + $0x400] sm:$0xff]
    %v178 = vld [vmem:[#allocation2 + $0x408] sm:$0xff]
    %v179 = vld [vmem:[#allocation2 + $0x410] sm:$0xff]
    %v180 = vld [vmem:[#allocation2 + $0x418] sm:$0xff]
    %v181 = vld [vmem:[#allocation2 + $0x420] sm:$0xff]
    %v182 = vld [vmem:[#allocation2 + $0x428] sm:$0xff]
    %v183 = vld [vmem:[#allocation2 + $0x430] sm:$0xff]
    %v184 = vld [vmem:[#allocation2 + $0x438] sm:$0xff]
    %v185 = vld [vmem:[#allocation2 + $0x440] sm:$0xff]
    %v186 = vld [vmem:[#allocation2 + $0x448] sm:$0xff]
    %v187 = vld [vmem:[#allocation2 + $0x450] sm:$0xff]
    %v188 = vld [vmem:[#allocation2 + $0x458] sm:$0xff]
    %v189 = vld [vmem:[#allocation2 + $0x460] sm:$0xff]
    %v190 = vld [vmem:[#allocation2 + $0x468] sm:$0xff]
    %v191 = vld [vmem:[#allocation2 + $0x470] sm:$0xff]
    %v192 = vld [vmem:[#allocation2 + $0x478] sm:$0xff]
    %v193 = vld [vmem:[#allocation2 + $0x480] sm:$0xff]
    %v194 = vld [vmem:[#allocation2 + $0x488] sm:$0xff]
    %v195 = vld [vmem:[#allocation2 + $0x490] sm:$0xff]
    %v196 = vld [vmem:[#allocation2 + $0x498] sm:$0xff]
    %v197 = vld [vmem:[#allocation2 + $0x4a0] sm:$0xff]
    %v198 = vld [vmem:[#allocation2 + $0x4a8] sm:$0xff]
    %v199 = vld [vmem:[#allocation2 + $0x4b0] sm:$0xff]
    %v200 = vld [vmem:[#allocation2 + $0x4b8] sm:$0xff]
    %v201 = vld [vmem:[#allocation2 + $0x4c0] sm:$0xff]
    %v202 = vld [vmem:[#allocation2 + $0x4c8] sm:$0xff]
    %v203 = vld [vmem:[#allocation2 + $0x4d0] sm:$0xff]
    %v204 = vld [vmem:[#allocation2 + $0x4d8] sm:$0xff]
    %v205 = vld [vmem:[#allocation2 + $0x4e0] sm:$0xff]
    %v206 = vld [vmem:[#allocation2 + $0x4e8] sm:$0xff]
    %v207 = vld [vmem:[#allocation2 + $0x4f0] sm:$0xff]
    %v208 = vld [vmem:[#allocation2 + $0x4f8] sm:$0xff]
    %v209 = vld [vmem:[#allocation2 + $0x500] sm:$0xff]
    %v210 = vld [vmem:[#allocation2 + $0x508] sm:$0xff]
    %v211 = vld [vmem:[#allocation2 + $0x510] sm:$0xff]
    %v212 = vld [vmem:[#allocation2 + $0x518] sm:$0xff]
    %v213 = vld [vmem:[#allocation2 + $0x520] sm:$0xff]
    %v214 = vld [vmem:[#allocation2 + $0x528] sm:$0xff]
    %v215 = vld [vmem:[#allocation2 + $0x530] sm:$0xff]
    %v216 = vld [vmem:[#allocation2 + $0x538] sm:$0xff]
    %v217 = vld [vmem:[#allocation2 + $0x540] sm:$0xff]
    %v218 = vld [vmem:[#allocation2 + $0x548] sm:$0xff]
    %v219 = vld [vmem:[#allocation2 + $0x550] sm:$0xff]
    %v220 = vld [vmem:[#allocation2 + $0x558] sm:$0xff]
    %v221 = vld [vmem:[#allocation2 + $0x560] sm:$0xff]
    %v222 = vld [vmem:[#allocation2 + $0x568] sm:$0xff]
    %v223 = vld [vmem:[#allocation2 + $0x570] sm:$0xff]
    %v224 = vld [vmem:[#allocation2 + $0x578] sm:$0xff]
    %v225 = vld [vmem:[#allocation2 + $0x580] sm:$0xff]
    %v226 = vld [vmem:[#allocation2 + $0x588] sm:$0xff]
    %v227 = vld [vmem:[#allocation2 + $0x590] sm:$0xff]
    %v228 = vld [vmem:[#allocation2 + $0x598] sm:$0xff]
    %v229 = vld [vmem:[#allocation2 + $0x5a0] sm:$0xff]
    %v230 = vld [vmem:[#allocation2 + $0x5a8] sm:$0xff]
    %v231 = vld [vmem:[#allocation2 + $0x5b0] sm:$0xff]
    %v232 = vld [vmem:[#allocation2 + $0x5b8] sm:$0xff]
    %v233 = vld [vmem:[#allocation2 + $0x5c0] sm:$0xff]
    %v234 = vld [vmem:[#allocation2 + $0x5c8] sm:$0xff]
    %v235 = vld [vmem:[#allocation2 + $0x5d0] sm:$0xff]
    %v236 = vld [vmem:[#allocation2 + $0x5d8] sm:$0xff]
    %v237 = vld [vmem:[#allocation2 + $0x5e0] sm:$0xff]
    %v238 = vld [vmem:[#allocation2 + $0x5e8] sm:$0xff]
    %v239 = vld [vmem:[#allocation2 + $0x5f0] sm:$0xff]
    %v240 = vld [vmem:[#allocation2 + $0x5f8] sm:$0xff]
    %v241 = vpack.c.bf16 %v52, %v49
    %v242 = vpack.c.bf16 %v53, %v50
    %v243 = vpack.c.bf16 %v54, %v51
    %v244 = vpack.c.bf16 %v58, %v55
    %v245 = vpack.c.bf16 %v59, %v56
    %v246 = vpack.c.bf16 %v60, %v57
    %v247 = vpack.c.bf16 %v64, %v61
    %v248 = vpack.c.bf16 %v65, %v62
    %v249 = vpack.c.bf16 %v66, %v63
    %v250 = vpack.c.bf16 %v70, %v67
    %v251 = vpack.c.bf16 %v71, %v68
    %v252 = vpack.c.bf16 %v72, %v69
    %v253 = vpack.c.bf16 %v76, %v73
    %v254 = vpack.c.bf16 %v77, %v74
    %v255 = vpack.c.bf16 %v78, %v75
    %v256 = vpack.c.bf16 %v82, %v79
    %v257 = vpack.c.bf16 %v83, %v80
    %v258 = vpack.c.bf16 %v84, %v81
    %v259 = vpack.c.bf16 %v88, %v85
    %v260 = vpack.c.bf16 %v89, %v86
    %v261 = vpack.c.bf16 %v90, %v87
    %v262 = vpack.c.bf16 %v94, %v91
    %v263 = vpack.c.bf16 %v95, %v92
    %v264 = vpack.c.bf16 %v96, %v93
    %v265 = vpack.c.bf16 %v100, %v97
    %v266 = vpack.c.bf16 %v101, %v98
    %v267 = vpack.c.bf16 %v102, %v99
    %v268 = vpack.c.bf16 %v106, %v103
    %v269 = vpack.c.bf16 %v107, %v104
    %v270 = vpack.c.bf16 %v108, %v105
    %v271 = vpack.c.bf16 %v112, %v109
    %v272 = vpack.c.bf16 %v113, %v110
    %v273 = vpack.c.bf16 %v114, %v111
    %v274 = vpack.c.bf16 %v118, %v115
    %v275 = vpack.c.bf16 %v119, %v116
    %v276 = vpack.c.bf16 %v120, %v117
    %v277 = vpack.c.bf16 %v124, %v121
    %v278 = vpack.c.bf16 %v125, %v122
    %v279 = vpack.c.bf16 %v126, %v123
    %v280 = vpack.c.bf16 %v130, %v127
    %v281 = vpack.c.bf16 %v131, %v128
    %v282 = vpack.c.bf16 %v132, %v129
    %v283 = vpack.c.bf16 %v136, %v133
    %v284 = vpack.c.bf16 %v137, %v134
    %v285 = vpack.c.bf16 %v138, %v135
    %v286 = vpack.c.bf16 %v142, %v139
    %v287 = vpack.c.bf16 %v143, %v140
    %v288 = vpack.c.bf16 %v144, %v141
    %v289 = vpack.c.bf16 %v148, %v145
    %v290 = vpack.c.bf16 %v149, %v146
    %v291 = vpack.c.bf16 %v150, %v147
    %v292 = vpack.c.bf16 %v154, %v151
    %v293 = vpack.c.bf16 %v155, %v152
    %v294 = vpack.c.bf16 %v156, %v153
    %v295 = vpack.c.bf16 %v160, %v157
    %v296 = vpack.c.bf16 %v161, %v158
    %v297 = vpack.c.bf16 %v162, %v159
    %v298 = vpack.c.bf16 %v166, %v163
    %v299 = vpack.c.bf16 %v167, %v164
    %v300 = vpack.c.bf16 %v168, %v165
    %v301 = vpack.c.bf16 %v172, %v169
    %v302 = vpack.c.bf16 %v173, %v170
    %v303 = vpack.c.bf16 %v174, %v171
    %v304 = vpack.c.bf16 %v178, %v175
    %v305 = vpack.c.bf16 %v179, %v176
    %v306 = vpack.c.bf16 %v180, %v177
    %v307 = vpack.c.bf16 %v184, %v181
    %v308 = vpack.c.bf16 %v185, %v182
    %v309 = vpack.c.bf16 %v186, %v183
    %v310 = vpack.c.bf16 %v190, %v187
    %v311 = vpack.c.bf16 %v191, %v188
    %v312 = vpack.c.bf16 %v192, %v189
    %v313 = vpack.c.bf16 %v196, %v193
    %v314 = vpack.c.bf16 %v197, %v194
    %v315 = vpack.c.bf16 %v198, %v195
    %v316 = vpack.c.bf16 %v202, %v199
    %v317 = vpack.c.bf16 %v203, %v200
    %v318 = vpack.c.bf16 %v204, %v201
    %v319 = vpack.c.bf16 %v208, %v205
    %v320 = vpack.c.bf16 %v209, %v206
    %v321 = vpack.c.bf16 %v210, %v207
    %v322 = vpack.c.bf16 %v214, %v211
    %v323 = vpack.c.bf16 %v215, %v212
    %v324 = vpack.c.bf16 %v216, %v213
    %v325 = vpack.c.bf16 %v220, %v217
    %v326 = vpack.c.bf16 %v221, %v218
    %v327 = vpack.c.bf16 %v222, %v219
    %v328 = vpack.c.bf16 %v226, %v223
    %v329 = vpack.c.bf16 %v227, %v224
    %v330 = vpack.c.bf16 %v228, %v225
    %v331 = vpack.c.bf16 %v232, %v229
    %v332 = vpack.c.bf16 %v233, %v230
    %v333 = vpack.c.bf16 %v234, %v231
    %v334 = vpack.c.bf16 %v238, %v235
    %v335 = vpack.c.bf16 %v239, %v236
    %v336 = vpack.c.bf16 %v240, %v237
    %v337 = vld [vmem:[#allocation4] sm:$0xff]
    %v338 = vld [vmem:[#allocation4 + $0x8] sm:$0xff]
    %v339 = vld [vmem:[#allocation4 + $0x10] sm:$0xff]
    %v340 = vld [vmem:[#allocation4 + $0x18] sm:$0xff]
    %v341 = vld [vmem:[#allocation4 + $0x20] sm:$0xff]
    %v342 = vld [vmem:[#allocation4 + $0x28] sm:$0xff]
    %v343 = vld [vmem:[#allocation4 + $0x30] sm:$0xff]
    %v344 = vld [vmem:[#allocation4 + $0x38] sm:$0xff]
    %v345 = vld [vmem:[#allocation4 + $0x40] sm:$0xff]
    %v346 = vld [vmem:[#allocation4 + $0x48] sm:$0xff]
    %v347 = vld [vmem:[#allocation4 + $0x50] sm:$0xff]
    %v348 = vld [vmem:[#allocation4 + $0x58] sm:$0xff]
    %v349 = vld [vmem:[#allocation4 + $0x60] sm:$0xff]
    %v350 = vld [vmem:[#allocation4 + $0x68] sm:$0xff]
    %v351 = vld [vmem:[#allocation4 + $0x70] sm:$0xff]
    %v352 = vld [vmem:[#allocation4 + $0x78] sm:$0xff]
    %v353 = vld [vmem:[#allocation4 + $0x80] sm:$0xff]
    %v354 = vld [vmem:[#allocation4 + $0x88] sm:$0xff]
    %v355 = vld [vmem:[#allocation4 + $0x90] sm:$0xff]
    %v356 = vld [vmem:[#allocation4 + $0x98] sm:$0xff]
    %v357 = vld [vmem:[#allocation4 + $0xa0] sm:$0xff]
    %v358 = vld [vmem:[#allocation4 + $0xa8] sm:$0xff]
    %v359 = vld [vmem:[#allocation4 + $0xb0] sm:$0xff]
    %v360 = vld [vmem:[#allocation4 + $0xb8] sm:$0xff]
    %v361 = vld [vmem:[#allocation4 + $0xc0] sm:$0xff]
    %v362 = vld [vmem:[#allocation4 + $0xc8] sm:$0xff]
    %v363 = vld [vmem:[#allocation4 + $0xd0] sm:$0xff]
    %v364 = vld [vmem:[#allocation4 + $0xd8] sm:$0xff]
    %v365 = vld [vmem:[#allocation4 + $0xe0] sm:$0xff]
    %v366 = vld [vmem:[#allocation4 + $0xe8] sm:$0xff]
    %v367 = vld [vmem:[#allocation4 + $0xf0] sm:$0xff]
    %v368 = vld [vmem:[#allocation4 + $0xf8] sm:$0xff]
    %v369 = vld [vmem:[#allocation4 + $0x100] sm:$0xff]
    %v370 = vld [vmem:[#allocation4 + $0x108] sm:$0xff]
    %v371 = vld [vmem:[#allocation4 + $0x110] sm:$0xff]
    %v372 = vld [vmem:[#allocation4 + $0x118] sm:$0xff]
    %v373 = vld [vmem:[#allocation4 + $0x120] sm:$0xff]
    %v374 = vld [vmem:[#allocation4 + $0x128] sm:$0xff]
    %v375 = vld [vmem:[#allocation4 + $0x130] sm:$0xff]
    %v376 = vld [vmem:[#allocation4 + $0x138] sm:$0xff]
    %v377 = vld [vmem:[#allocation4 + $0x140] sm:$0xff]
    %v378 = vld [vmem:[#allocation4 + $0x148] sm:$0xff]
    %v379 = vld [vmem:[#allocation4 + $0x150] sm:$0xff]
    %v380 = vld [vmem:[#allocation4 + $0x158] sm:$0xff]
    %v381 = vld [vmem:[#allocation4 + $0x160] sm:$0xff]
    %v382 = vld [vmem:[#allocation4 + $0x168] sm:$0xff]
    %v383 = vld [vmem:[#allocation4 + $0x170] sm:$0xff]
    %v384 = vld [vmem:[#allocation4 + $0x178] sm:$0xff]
    %v385 = vld [vmem:[%s2] sm:$0x3]
    %v387 = vlaneseq
    %v388 = vshrl.u32 %v387, 7
    %v389 = vsub.s32 0, %v388
    %v390 = vrot.slane %v385, %v389
    %v391 = vlaneseq
    %v392 = vshrl.u32 %v391, 7
    %v393 = vsub.s32 1, %v392
    %v394 = vrot.slane %v385, %v393
    %v445 = vunpack.c.l.b16 %v337
    %v446 = vunpack.c.h.b16 %v337
    %v447 = vunpack.c.l.b16 %v338
    %v448 = vunpack.c.h.b16 %v338
    %v449 = vunpack.c.l.b16 %v339
    %v450 = vunpack.c.h.b16 %v339
    %v451 = vunpack.c.l.b16 %v340
    %v452 = vunpack.c.h.b16 %v340
    %v453 = vunpack.c.l.b16 %v341
    %v454 = vunpack.c.h.b16 %v341
    %v455 = vunpack.c.l.b16 %v342
    %v456 = vunpack.c.h.b16 %v342
    %v457 = vunpack.c.l.b16 %v343
    %v458 = vunpack.c.h.b16 %v343
    %v459 = vunpack.c.l.b16 %v344
    %v460 = vunpack.c.h.b16 %v344
    %v461 = vunpack.c.l.b16 %v345
    %v462 = vunpack.c.h.b16 %v345
    %v463 = vunpack.c.l.b16 %v346
    %v464 = vunpack.c.h.b16 %v346
    %v465 = vunpack.c.l.b16 %v347
    %v466 = vunpack.c.h.b16 %v347
    %v467 = vunpack.c.l.b16 %v348
    %v468 = vunpack.c.h.b16 %v348
    %v469 = vunpack.c.l.b16 %v349
    %v470 = vunpack.c.h.b16 %v349
    %v471 = vunpack.c.l.b16 %v350
    %v472 = vunpack.c.h.b16 %v350
    %v473 = vunpack.c.l.b16 %v351
    %v474 = vunpack.c.h.b16 %v351
    %v475 = vunpack.c.l.b16 %v352
    %v476 = vunpack.c.h.b16 %v352
    %v477 = vunpack.c.l.b16 %v353
    %v478 = vunpack.c.h.b16 %v353
    %v479 = vunpack.c.l.b16 %v354
    %v480 = vunpack.c.h.b16 %v354
    %v481 = vunpack.c.l.b16 %v355
    %v482 = vunpack.c.h.b16 %v355
    %v483 = vunpack.c.l.b16 %v356
    %v484 = vunpack.c.h.b16 %v356
    %v485 = vunpack.c.l.b16 %v357
    %v486 = vunpack.c.h.b16 %v357
    %v487 = vunpack.c.l.b16 %v358
    %v488 = vunpack.c.h.b16 %v358
    %v489 = vunpack.c.l.b16 %v359
    %v490 = vunpack.c.h.b16 %v359
    %v491 = vunpack.c.l.b16 %v360
    %v492 = vunpack.c.h.b16 %v360
    %v493 = vunpack.c.l.b16 %v361
    %v494 = vunpack.c.h.b16 %v361
    %v495 = vunpack.c.l.b16 %v362
    %v496 = vunpack.c.h.b16 %v362
    %v497 = vunpack.c.l.b16 %v363
    %v498 = vunpack.c.h.b16 %v363
    %v499 = vunpack.c.l.b16 %v364
    %v500 = vunpack.c.h.b16 %v364
    %v501 = vunpack.c.l.b16 %v365
    %v502 = vunpack.c.h.b16 %v365
    %v503 = vunpack.c.l.b16 %v366
    %v504 = vunpack.c.h.b16 %v366
    %v505 = vunpack.c.l.b16 %v367
    %v506 = vunpack.c.h.b16 %v367
    %v507 = vunpack.c.l.b16 %v368
    %v508 = vunpack.c.h.b16 %v368
    %v509 = vunpack.c.l.b16 %v369
    %v510 = vunpack.c.h.b16 %v369
    %v511 = vunpack.c.l.b16 %v370
    %v512 = vunpack.c.h.b16 %v370
    %v513 = vunpack.c.l.b16 %v371
    %v514 = vunpack.c.h.b16 %v371
    %v515 = vunpack.c.l.b16 %v372
    %v516 = vunpack.c.h.b16 %v372
    %v517 = vunpack.c.l.b16 %v373
    %v518 = vunpack.c.h.b16 %v373
    %v519 = vunpack.c.l.b16 %v374
    %v520 = vunpack.c.h.b16 %v374
    %v521 = vunpack.c.l.b16 %v375
    %v522 = vunpack.c.h.b16 %v375
    %v523 = vunpack.c.l.b16 %v376
    %v524 = vunpack.c.h.b16 %v376
    %v525 = vunpack.c.l.b16 %v377
    %v526 = vunpack.c.h.b16 %v377
    %v527 = vunpack.c.l.b16 %v378
    %v528 = vunpack.c.h.b16 %v378
    %v529 = vunpack.c.l.b16 %v379
    %v530 = vunpack.c.h.b16 %v379
    %v531 = vunpack.c.l.b16 %v380
    %v532 = vunpack.c.h.b16 %v380
    %v533 = vunpack.c.l.b16 %v381
    %v534 = vunpack.c.h.b16 %v381
    %v535 = vunpack.c.l.b16 %v382
    %v536 = vunpack.c.h.b16 %v382
    %v537 = vunpack.c.l.b16 %v383
    %v538 = vunpack.c.h.b16 %v383
    %v539 = vunpack.c.l.b16 %v384
    %v540 = vunpack.c.h.b16 %v384
    %v541 = vpack.c.b16 %v447, %v445
    %v542 = vpack.c.b16 %v448, %v446
    %v543 = vpack.c.b16 %v451, %v449
    %v544 = vpack.c.b16 %v452, %v450
    %v545 = vpack.c.b16 %v455, %v453
    %v546 = vpack.c.b16 %v456, %v454
    %v547 = vpack.c.b16 %v459, %v457
    %v548 = vpack.c.b16 %v460, %v458
    %v549 = vpack.c.b16 %v463, %v461
    %v550 = vpack.c.b16 %v464, %v462
    %v551 = vpack.c.b16 %v467, %v465
    %v552 = vpack.c.b16 %v468, %v466
    %v553 = vpack.c.b16 %v471, %v469
    %v554 = vpack.c.b16 %v472, %v470
    %v555 = vpack.c.b16 %v475, %v473
    %v556 = vpack.c.b16 %v476, %v474
    %v557 = vpack.c.b16 %v479, %v477
    %v558 = vpack.c.b16 %v480, %v478
    %v559 = vpack.c.b16 %v483, %v481
    %v560 = vpack.c.b16 %v484, %v482
    %v561 = vpack.c.b16 %v487, %v485
    %v562 = vpack.c.b16 %v488, %v486
    %v563 = vpack.c.b16 %v491, %v489
    %v564 = vpack.c.b16 %v492, %v490
    %v565 = vpack.c.b16 %v495, %v493
    %v566 = vpack.c.b16 %v496, %v494
    %v567 = vpack.c.b16 %v499, %v497
    %v568 = vpack.c.b16 %v500, %v498
    %v569 = vpack.c.b16 %v503, %v501
    %v570 = vpack.c.b16 %v504, %v502
    %v571 = vpack.c.b16 %v507, %v505
    %v572 = vpack.c.b16 %v508, %v506
    %v573 = vpack.c.b16 %v511, %v509
    %v574 = vpack.c.b16 %v512, %v510
    %v575 = vpack.c.b16 %v515, %v513
    %v576 = vpack.c.b16 %v516, %v514
    %v577 = vpack.c.b16 %v519, %v517
    %v578 = vpack.c.b16 %v520, %v518
    %v579 = vpack.c.b16 %v523, %v521
    %v580 = vpack.c.b16 %v524, %v522
    %v581 = vpack.c.b16 %v527, %v525
    %v582 = vpack.c.b16 %v528, %v526
    %v583 = vpack.c.b16 %v531, %v529
    %v584 = vpack.c.b16 %v532, %v530
    %v585 = vpack.c.b16 %v535, %v533
    %v586 = vpack.c.b16 %v536, %v534
    %v587 = vpack.c.b16 %v539, %v537
    %v588 = vpack.c.b16 %v540, %v538
    %637 = vmatprep.subr.bf16.mxu0 %v542
    %638 = vmatpush1.bf16.msra.mxu0 %v541
    %639 = vmatprep.subr.bf16.mxu0 %v544
    %640 = vmatpush1.bf16.msra.mxu0 %v543
    %641 = vmatprep.subr.bf16.mxu0 %v546
    %642 = vmatpush1.bf16.msra.mxu0 %v545
    %643 = vmatprep.subr.bf16.mxu0 %v548
    %644 = vmatpush1.bf16.msra.mxu0 %v547
    %645 = vmatprep.subr.bf16.mxu0 %v550
    %646 = vmatpush1.bf16.msra.mxu0 %v549
    %647 = vmatprep.subr.bf16.mxu0 %v552
    %648 = vmatpush1.bf16.msra.mxu0 %v551
    %649 = vmatprep.subr.bf16.mxu0 %v554
    %650 = vmatpush1.bf16.msra.mxu0 %v553
    %651 = vmatprep.subr.bf16.mxu0 %v556
    %652 = vmatpush1.bf16.msra.mxu0 %v555
    %653 = vmatprep.subr.bf16.mxu0 %v558
    %654 = vmatpush1.bf16.msra.mxu0 %v557
    %655 = vmatprep.subr.bf16.mxu0 %v560
    %656 = vmatpush1.bf16.msra.mxu0 %v559
    %657 = vmatprep.subr.bf16.mxu0 %v562
    %658 = vmatpush1.bf16.msra.mxu0 %v561
    %659 = vmatprep.subr.bf16.mxu0 %v564
    %660 = vmatpush1.bf16.msra.mxu0 %v563
    %661 = vmatprep.subr.bf16.mxu0 %v566
    %662 = vmatpush1.bf16.msra.mxu0 %v565
    %663 = vmatprep.subr.bf16.mxu0 %v568
    %664 = vmatpush1.bf16.msra.mxu0 %v567
    %665 = vmatprep.subr.bf16.mxu0 %v570
    %666 = vmatpush1.bf16.msra.mxu0 %v569
    %667 = vmatprep.subr.bf16.mxu0 %v572
    %668 = vmatpush1.bf16.msra.mxu0 %v571
    %669 = vmatprep.mubr.bf16.mxu0 %v242
    %670 = vmatmul.mubr.bf16.gmra.mrb[0].mxu0 %v241
    %v671 = vpop.f32.mrb[0].mxu0
    %v672 = vadd.f32 %v390, %v671
    %v673 = vpop.f32.mrb[0].mxu0
    %v674 = vadd.f32 %v394, %v673
    %v675 = vpop.f32.mrb[0].mxu0
    %v676 = vadd.f32 %v390, %v675
    %v677 = vpop.f32.mrb[0].mxu0
    %v678 = vadd.f32 %v394, %v677
    %679 = vmatprep.mubr.bf16.mxu0 %v245
    %680 = vmatmul.mubr.bf16.gmra.mrb[0].mxu0 %v244
    %v681 = vpop.f32.mrb[0].mxu0
    %v682 = vadd.f32 %v390, %v681
    %v683 = vpop.f32.mrb[0].mxu0
    %v684 = vadd.f32 %v394, %v683
    %v685 = vpop.f32.mrb[0].mxu0
    %v686 = vadd.f32 %v390, %v685
    %v687 = vpop.f32.mrb[0].mxu0
    %v688 = vadd.f32 %v394, %v687
    %689 = vmatprep.mubr.bf16.mxu0 %v248
    %690 = vmatmul.mubr.bf16.gmra.mrb[0].mxu0 %v247
    %v691 = vpop.f32.mrb[0].mxu0
    %v692 = vadd.f32 %v390, %v691
    %v693 = vpop.f32.mrb[0].mxu0
    %v694 = vadd.f32 %v394, %v693
    %v695 = vpop.f32.mrb[0].mxu0
    %v696 = vadd.f32 %v390, %v695
    %v697 = vpop.f32.mrb[0].mxu0
    %v698 = vadd.f32 %v394, %v697
    %699 = vmatprep.mubr.bf16.mxu0 %v251
    %700 = vmatmul.mubr.bf16.gmra.mrb[0].mxu0 %v250
    %v701 = vpop.f32.mrb[0].mxu0
    %v702 = vadd.f32 %v390, %v701
    %v703 = vpop.f32.mrb[0].mxu0
    %v704 = vadd.f32 %v394, %v703
    %v705 = vpop.f32.mrb[0].mxu0
    %v706 = vadd.f32 %v390, %v705
    %v707 = vpop.f32.mrb[0].mxu0
    %v708 = vadd.f32 %v394, %v707
    %709 = vmatprep.mubr.bf16.mxu0 %v254
    %710 = vmatmul.mubr.bf16.gmra.mrb[0].mxu0 %v253
    %v711 = vpop.f32.mrb[0].mxu0
    %v712 = vadd.f32 %v390, %v711
    %v713 = vpop.f32.mrb[0].mxu0
    %v714 = vadd.f32 %v394, %v713
    %v715 = vpop.f32.mrb[0].mxu0
    %v716 = vadd.f32 %v390, %v715
    %v717 = vpop.f32.mrb[0].mxu0
    %v718 = vadd.f32 %v394, %v717
    %719 = vmatprep.mubr.bf16.mxu0 %v257
    %720 = vmatmul.mubr.bf16.gmra.mrb[0].mxu0 %v256
    %v721 = vpop.f32.mrb[0].mxu0
    %v722 = vadd.f32 %v390, %v721
    %v723 = vpop.f32.mrb[0].mxu0
    %v724 = vadd.f32 %v394, %v723
    %v725 = vpop.f32.mrb[0].mxu0
    %v726 = vadd.f32 %v390, %v725
    %v727 = vpop.f32.mrb[0].mxu0
    %v728 = vadd.f32 %v394, %v727
    %729 = vmatprep.mubr.bf16.mxu0 %v260
    %730 = vmatmul.mubr.bf16.gmra.mrb[0].mxu0 %v259
    %v731 = vpop.f32.mrb[0].mxu0
    %v732 = vadd.f32 %v390, %v731
    %v733 = vpop.f32.mrb[0].mxu0
    %v734 = vadd.f32 %v394, %v733
    %v735 = vpop.f32.mrb[0].mxu0
    %v736 = vadd.f32 %v390, %v735
    %v737 = vpop.f32.mrb[0].mxu0
    %v738 = vadd.f32 %v394, %v737
    %739 = vmatprep.mubr.bf16.mxu0 %v263
    %740 = vmatmul.mubr.bf16.gmra.mrb[0].mxu0 %v262
    %v741 = vpop.f32.mrb[0].mxu0
    %v742 = vadd.f32 %v390, %v741
    %v743 = vpop.f32.mrb[0].mxu0
    %v744 = vadd.f32 %v394, %v743
    %v745 = vpop.f32.mrb[0].mxu0
    %v746 = vadd.f32 %v390, %v745
    %v747 = vpop.f32.mrb[0].mxu0
    %v748 = vadd.f32 %v394, %v747
    %749 = vmatprep.mubr.bf16.mxu0 %v266
    %750 = vmatmul.mubr.bf16.gmra.mrb[0].mxu0 %v265
    %v751 = vpop.f32.mrb[0].mxu0
    %v752 = vadd.f32 %v390, %v751
    %v753 = vpop.f32.mrb[0].mxu0
    %v754 = vadd.f32 %v394, %v753
    %v755 = vpop.f32.mrb[0].mxu0
    %v756 = vadd.f32 %v390, %v755
    %v757 = vpop.f32.mrb[0].mxu0
    %v758 = vadd.f32 %v394, %v757
    %759 = vmatprep.mubr.bf16.mxu0 %v269
    %760 = vmatmul.mubr.bf16.gmra.mrb[0].mxu0 %v268
    %v761 = vpop.f32.mrb[0].mxu0
    %v762 = vadd.f32 %v390, %v761
    %v763 = vpop.f32.mrb[0].mxu0
    %v764 = vadd.f32 %v394, %v763
    %v765 = vpop.f32.mrb[0].mxu0
    %v766 = vadd.f32 %v390, %v765
    %v767 = vpop.f32.mrb[0].mxu0
    %v768 = vadd.f32 %v394, %v767
    %769 = vmatprep.mubr.bf16.mxu0 %v272
    %770 = vmatmul.mubr.bf16.gmra.mrb[0].mxu0 %v271
    %v771 = vpop.f32.mrb[0].mxu0
    %v772 = vadd.f32 %v390, %v771
    %v773 = vpop.f32.mrb[0].mxu0
    %v774 = vadd.f32 %v394, %v773
    %v775 = vpop.f32.mrb[0].mxu0
    %v776 = vadd.f32 %v390, %v775
    %v777 = vpop.f32.mrb[0].mxu0
    %v778 = vadd.f32 %v394, %v777
    %779 = vmatprep.mubr.bf16.mxu0 %v275
    %780 = vmatmul.mubr.bf16.gmra.mrb[0].mxu0 %v274
    %v781 = vpop.f32.mrb[0].mxu0
    %v782 = vadd.f32 %v390, %v781
    %v783 = vpop.f32.mrb[0].mxu0
    %v784 = vadd.f32 %v394, %v783
    %v785 = vpop.f32.mrb[0].mxu0
    %v786 = vadd.f32 %v390, %v785
    %v787 = vpop.f32.mrb[0].mxu0
    %v788 = vadd.f32 %v394, %v787
    %789 = vmatprep.mubr.bf16.mxu0 %v278
    %790 = vmatmul.mubr.bf16.gmra.mrb[0].mxu0 %v277
    %v791 = vpop.f32.mrb[0].mxu0
    %v792 = vadd.f32 %v390, %v791
    %v793 = vpop.f32.mrb[0].mxu0
    %v794 = vadd.f32 %v394, %v793
    %v795 = vpop.f32.mrb[0].mxu0
    %v796 = vadd.f32 %v390, %v795
    %v797 = vpop.f32.mrb[0].mxu0
    %v798 = vadd.f32 %v394, %v797
    %799 = vmatprep.mubr.bf16.mxu0 %v281
    %800 = vmatmul.mubr.bf16.gmra.mrb[0].mxu0 %v280
    %v801 = vpop.f32.mrb[0].mxu0
    %v802 = vadd.f32 %v390, %v801
    %v803 = vpop.f32.mrb[0].mxu0
    %v804 = vadd.f32 %v394, %v803
    %v805 = vpop.f32.mrb[0].mxu0
    %v806 = vadd.f32 %v390, %v805
    %v807 = vpop.f32.mrb[0].mxu0
    %v808 = vadd.f32 %v394, %v807
    %809 = vmatprep.mubr.bf16.mxu0 %v284
    %810 = vmatmul.mubr.bf16.gmra.mrb[0].mxu0 %v283
    %v811 = vpop.f32.mrb[0].mxu0
    %v812 = vadd.f32 %v390, %v811
    %v813 = vpop.f32.mrb[0].mxu0
    %v814 = vadd.f32 %v394, %v813
    %v815 = vpop.f32.mrb[0].mxu0
    %v816 = vadd.f32 %v390, %v815
    %v817 = vpop.f32.mrb[0].mxu0
    %v818 = vadd.f32 %v394, %v817
    %819 = vmatprep.mubr.bf16.mxu0 %v287
    %820 = vmatmul.mubr.bf16.gmra.mrb[0].mxu0 %v286
    %v821 = vpop.f32.mrb[0].mxu0
    %v822 = vadd.f32 %v390, %v821
    %v823 = vpop.f32.mrb[0].mxu0
    %v824 = vadd.f32 %v394, %v823
    %v825 = vpop.f32.mrb[0].mxu0
    %v826 = vadd.f32 %v390, %v825
    %v827 = vpop.f32.mrb[0].mxu0
    %v828 = vadd.f32 %v394, %v827
    %829 = vmatprep.mubr.bf16.mxu0 %v290
    %830 = vmatmul.mubr.bf16.gmra.mrb[0].mxu0 %v289
    %v831 = vpop.f32.mrb[0].mxu0
    %v832 = vadd.f32 %v390, %v831
    %v833 = vpop.f32.mrb[0].mxu0
    %v834 = vadd.f32 %v394, %v833
    %v835 = vpop.f32.mrb[0].mxu0
    %v836 = vadd.f32 %v390, %v835
    %v837 = vpop.f32.mrb[0].mxu0
    %v838 = vadd.f32 %v394, %v837
    %839 = vmatprep.mubr.bf16.mxu0 %v293
    %840 = vmatmul.mubr.bf16.gmra.mrb[0].mxu0 %v292
    %v841 = vpop.f32.mrb[0].mxu0
    %v842 = vadd.f32 %v390, %v841
    %v843 = vpop.f32.mrb[0].mxu0
    %v844 = vadd.f32 %v394, %v843
    %v845 = vpop.f32.mrb[0].mxu0
    %v846 = vadd.f32 %v390, %v845
    %v847 = vpop.f32.mrb[0].mxu0
    %v848 = vadd.f32 %v394, %v847
    %849 = vmatprep.mubr.bf16.mxu0 %v296
    %850 = vmatmul.mubr.bf16.gmra.mrb[0].mxu0 %v295
    %v851 = vpop.f32.mrb[0].mxu0
    %v852 = vadd.f32 %v390, %v851
    %v853 = vpop.f32.mrb[0].mxu0
    %v854 = vadd.f32 %v394, %v853
    %v855 = vpop.f32.mrb[0].mxu0
    %v856 = vadd.f32 %v390, %v855
    %v857 = vpop.f32.mrb[0].mxu0
    %v858 = vadd.f32 %v394, %v857
    %859 = vmatprep.mubr.bf16.mxu0 %v299
    %860 = vmatmul.mubr.bf16.gmra.mrb[0].mxu0 %v298
    %v861 = vpop.f32.mrb[0].mxu0
    %v862 = vadd.f32 %v390, %v861
    %v863 = vpop.f32.mrb[0].mxu0
    %v864 = vadd.f32 %v394, %v863
    %v865 = vpop.f32.mrb[0].mxu0
    %v866 = vadd.f32 %v390, %v865
    %v867 = vpop.f32.mrb[0].mxu0
    %v868 = vadd.f32 %v394, %v867
    %869 = vmatprep.mubr.bf16.mxu0 %v302
    %870 = vmatmul.mubr.bf16.gmra.mrb[0].mxu0 %v301
    %v871 = vpop.f32.mrb[0].mxu0
    %v872 = vadd.f32 %v390, %v871
    %v873 = vpop.f32.mrb[0].mxu0
    %v874 = vadd.f32 %v394, %v873
    %v875 = vpop.f32.mrb[0].mxu0
    %v876 = vadd.f32 %v390, %v875
    %v877 = vpop.f32.mrb[0].mxu0
    %v878 = vadd.f32 %v394, %v877
    %879 = vmatprep.mubr.bf16.mxu0 %v305
    %880 = vmatmul.mubr.bf16.gmra.mrb[0].mxu0 %v304
    %v881 = vpop.f32.mrb[0].mxu0
    %v882 = vadd.f32 %v390, %v881
    %v883 = vpop.f32.mrb[0].mxu0
    %v884 = vadd.f32 %v394, %v883
    %v885 = vpop.f32.mrb[0].mxu0
    %v886 = vadd.f32 %v390, %v885
    %v887 = vpop.f32.mrb[0].mxu0
    %v888 = vadd.f32 %v394, %v887
    %889 = vmatprep.mubr.bf16.mxu0 %v308
    %890 = vmatmul.mubr.bf16.gmra.mrb[0].mxu0 %v307
    %v891 = vpop.f32.mrb[0].mxu0
    %v892 = vadd.f32 %v390, %v891
    %v893 = vpop.f32.mrb[0].mxu0
    %v894 = vadd.f32 %v394, %v893
    %v895 = vpop.f32.mrb[0].mxu0
    %v896 = vadd.f32 %v390, %v895
    %v897 = vpop.f32.mrb[0].mxu0
    %v898 = vadd.f32 %v394, %v897
    %899 = vmatprep.mubr.bf16.mxu0 %v311
    %900 = vmatmul.mubr.bf16.gmra.mrb[0].mxu0 %v310
    %v901 = vpop.f32.mrb[0].mxu0
    %v902 = vadd.f32 %v390, %v901
    %v903 = vpop.f32.mrb[0].mxu0
    %v904 = vadd.f32 %v394, %v903
    %v905 = vpop.f32.mrb[0].mxu0
    %v906 = vadd.f32 %v390, %v905
    %v907 = vpop.f32.mrb[0].mxu0
    %v908 = vadd.f32 %v394, %v907
    %909 = vmatprep.mubr.bf16.mxu0 %v314
    %910 = vmatmul.mubr.bf16.gmra.mrb[0].mxu0 %v313
    %v911 = vpop.f32.mrb[0].mxu0
    %v912 = vadd.f32 %v390, %v911
    %v913 = vpop.f32.mrb[0].mxu0
    %v914 = vadd.f32 %v394, %v913
    %v915 = vpop.f32.mrb[0].mxu0
    %v916 = vadd.f32 %v390, %v915
    %v917 = vpop.f32.mrb[0].mxu0
    %v918 = vadd.f32 %v394, %v917
    %919 = vmatprep.mubr.bf16.mxu0 %v317
    %920 = vmatmul.mubr.bf16.gmra.mrb[0].mxu0 %v316
    %v921 = vpop.f32.mrb[0].mxu0
    %v922 = vadd.f32 %v390, %v921
    %v923 = vpop.f32.mrb[0].mxu0
    %v924 = vadd.f32 %v394, %v923
    %v925 = vpop.f32.mrb[0].mxu0
    %v926 = vadd.f32 %v390, %v925
    %v927 = vpop.f32.mrb[0].mxu0
    %v928 = vadd.f32 %v394, %v927
    %929 = vmatprep.mubr.bf16.mxu0 %v320
    %930 = vmatmul.mubr.bf16.gmra.mrb[0].mxu0 %v319
    %v931 = vpop.f32.mrb[0].mxu0
    %v932 = vadd.f32 %v390, %v931
    %v933 = vpop.f32.mrb[0].mxu0
    %v934 = vadd.f32 %v394, %v933
    %v935 = vpop.f32.mrb[0].mxu0
    %v936 = vadd.f32 %v390, %v935
    %v937 = vpop.f32.mrb[0].mxu0
    %v938 = vadd.f32 %v394, %v937
    %939 = vmatprep.mubr.bf16.mxu0 %v323
    %940 = vmatmul.mubr.bf16.gmra.mrb[0].mxu0 %v322
    %v941 = vpop.f32.mrb[0].mxu0
    %v942 = vadd.f32 %v390, %v941
    %v943 = vpop.f32.mrb[0].mxu0
    %v944 = vadd.f32 %v394, %v943
    %v945 = vpop.f32.mrb[0].mxu0
    %v946 = vadd.f32 %v390, %v945
    %v947 = vpop.f32.mrb[0].mxu0
    %v948 = vadd.f32 %v394, %v947
    %949 = vmatprep.mubr.bf16.mxu0 %v326
    %950 = vmatmul.mubr.bf16.gmra.mrb[0].mxu0 %v325
    %v951 = vpop.f32.mrb[0].mxu0
    %v952 = vadd.f32 %v390, %v951
    %v953 = vpop.f32.mrb[0].mxu0
    %v954 = vadd.f32 %v394, %v953
    %v955 = vpop.f32.mrb[0].mxu0
    %v956 = vadd.f32 %v390, %v955
    %v957 = vpop.f32.mrb[0].mxu0
    %v958 = vadd.f32 %v394, %v957
    %959 = vmatprep.mubr.bf16.mxu0 %v329
    %960 = vmatmul.mubr.bf16.gmra.mrb[0].mxu0 %v328
    %v961 = vpop.f32.mrb[0].mxu0
    %v962 = vadd.f32 %v390, %v961
    %v963 = vpop.f32.mrb[0].mxu0
    %v964 = vadd.f32 %v394, %v963
    %v965 = vpop.f32.mrb[0].mxu0
    %v966 = vadd.f32 %v390, %v965
    %v967 = vpop.f32.mrb[0].mxu0
    %v968 = vadd.f32 %v394, %v967
    %969 = vmatprep.mubr.bf16.mxu0 %v332
    %970 = vmatmul.mubr.bf16.gmra.mrb[0].mxu0 %v331
    %v971 = vpop.f32.mrb[0].mxu0
    %v972 = vadd.f32 %v390, %v971
    %v973 = vpop.f32.mrb[0].mxu0
    %v974 = vadd.f32 %v394, %v973
    %v975 = vpop.f32.mrb[0].mxu0
    %v976 = vadd.f32 %v390, %v975
    %v977 = vpop.f32.mrb[0].mxu0
    %v978 = vadd.f32 %v394, %v977
    %979 = vmatprep.mubr.bf16.mxu0 %v335
    %980 = vmatmul.mubr.bf16.gmra.mrb[0].mxu0 %v334
    %v981 = vpop.f32.mrb[0].mxu0
    %v982 = vadd.f32 %v390, %v981
    %v983 = vpop.f32.mrb[0].mxu0
    %v984 = vadd.f32 %v394, %v983
    %v985 = vpop.f32.mrb[0].mxu0
    %v986 = vadd.f32 %v390, %v985
    %v987 = vpop.f32.mrb[0].mxu0
    %v988 = vadd.f32 %v394, %v987
    %989 = vdwg.mxu0
    %990 = vmatprep.subr.bf16.mxu0 %v574
    %991 = vmatpush1.bf16.msra.mxu0 %v573
    %992 = vmatprep.subr.bf16.mxu0 %v576
    %993 = vmatpush1.bf16.msra.mxu0 %v575
    %994 = vmatprep.subr.bf16.mxu0 %v578
    %995 = vmatpush1.bf16.msra.mxu0 %v577
    %996 = vmatprep.subr.bf16.mxu0 %v580
    %997 = vmatpush1.bf16.msra.mxu0 %v579
    %998 = vmatprep.subr.bf16.mxu0 %v582
    %999 = vmatpush1.bf16.msra.mxu0 %v581
    %1000 = vmatprep.subr.bf16.mxu0 %v584
    %1001 = vmatpush1.bf16.msra.mxu0 %v583
    %1002 = vmatprep.subr.bf16.mxu0 %v586
    %1003 = vmatpush1.bf16.msra.mxu0 %v585
    %1004 = vmatprep.subr.bf16.mxu0 %v588
    %1005 = vmatpush1.bf16.msra.mxu0 %v587
    %1006 = vmatprep.subr.bf16.mxu0 0
    %1007 = vmatpush1.bf16.msra.mxu0 0
    %1008 = vmatprep.subr.bf16.mxu0 0
    %1009 = vmatpush1.bf16.msra.mxu0 0
    %1010 = vmatprep.subr.bf16.mxu0 0
    %1011 = vmatpush1.bf16.msra.mxu0 0
    %1012 = vmatprep.subr.bf16.mxu0 0
    %1013 = vmatpush1.bf16.msra.mxu0 0
    %1014 = vmatprep.subr.bf16.mxu0 0
    %1015 = vmatpush1.bf16.msra.mxu0 0
    %1016 = vmatprep.subr.bf16.mxu0 0
    %1017 = vmatpush1.bf16.msra.mxu0 0
    %1018 = vmatprep.subr.bf16.mxu0 0
    %1019 = vmatpush1.bf16.msra.mxu0 0
    %1020 = vmatprep.subr.bf16.mxu0 0
    %1021 = vmatpush1.bf16.msra.mxu0 0
    %1022 = vmatprep.mubr.bf16.mxu0 0
    %1023 = vmatmul.mubr.bf16.gmra.mrb[0].mxu0 %v243
    %v1024 = vpop.f32.mrb[0].mxu0
    %v1025 = vadd.f32 %v672, %v1024
    %v1026 = vpop.f32.mrb[0].mxu0
    %v1027 = vadd.f32 %v674, %v1026
    %v1028 = vpop.f32.mrb[0].mxu0
    %v1029 = vadd.f32 %v676, %v1028
    %v1030 = vpop.f32.mrb[0].mxu0
    %v1031 = vadd.f32 %v678, %v1030
    %1032 = vmatprep.mubr.bf16.mxu0 0
    %1033 = vmatmul.mubr.bf16.gmra.mrb[0].mxu0 %v246
    %v1034 = vpop.f32.mrb[0].mxu0
    %v1035 = vadd.f32 %v682, %v1034
    %v1036 = vpop.f32.mrb[0].mxu0
    %v1037 = vadd.f32 %v684, %v1036
    %v1038 = vpop.f32.mrb[0].mxu0
    %v1039 = vadd.f32 %v686, %v1038
    %v1040 = vpop.f32.mrb[0].mxu0
    %v1041 = vadd.f32 %v688, %v1040
    %1042 = vmatprep.mubr.bf16.mxu0 0
    %1043 = vmatmul.mubr.bf16.gmra.mrb[0].mxu0 %v249
    %v1044 = vpop.f32.mrb[0].mxu0
    %v1045 = vadd.f32 %v692, %v1044
    %v1046 = vpop.f32.mrb[0].mxu0
    %v1047 = vadd.f32 %v694, %v1046
    %v1048 = vpop.f32.mrb[0].mxu0
    %v1049 = vadd.f32 %v696, %v1048
    %v1050 = vpop.f32.mrb[0].mxu0
    %v1051 = vadd.f32 %v698, %v1050
    %1052 = vmatprep.mubr.bf16.mxu0 0
    %1053 = vmatmul.mubr.bf16.gmra.mrb[0].mxu0 %v252
    %v1054 = vpop.f32.mrb[0].mxu0
    %v1055 = vadd.f32 %v702, %v1054
    %v1056 = vpop.f32.mrb[0].mxu0
    %v1057 = vadd.f32 %v704, %v1056
    %v1058 = vpop.f32.mrb[0].mxu0
    %v1059 = vadd.f32 %v706, %v1058
    %v1060 = vpop.f32.mrb[0].mxu0
    %v1061 = vadd.f32 %v708, %v1060
    %1062 = vmatprep.mubr.bf16.mxu0 0
    %1063 = vmatmul.mubr.bf16.gmra.mrb[0].mxu0 %v255
    %v1064 = vpop.f32.mrb[0].mxu0
    %v1065 = vadd.f32 %v712, %v1064
    %v1066 = vpop.f32.mrb[0].mxu0
    %v1067 = vadd.f32 %v714, %v1066
    %v1068 = vpop.f32.mrb[0].mxu0
    %v1069 = vadd.f32 %v716, %v1068
    %v1070 = vpop.f32.mrb[0].mxu0
    %v1071 = vadd.f32 %v718, %v1070
    %1072 = vmatprep.mubr.bf16.mxu0 0
    %1073 = vmatmul.mubr.bf16.gmra.mrb[0].mxu0 %v258
    %v1074 = vpop.f32.mrb[0].mxu0
    %v1075 = vadd.f32 %v722, %v1074
    %v1076 = vpop.f32.mrb[0].mxu0
    %v1077 = vadd.f32 %v724, %v1076
    %v1078 = vpop.f32.mrb[0].mxu0
    %v1079 = vadd.f32 %v726, %v1078
    %v1080 = vpop.f32.mrb[0].mxu0
    %v1081 = vadd.f32 %v728, %v1080
    %1082 = vmatprep.mubr.bf16.mxu0 0
    %1083 = vmatmul.mubr.bf16.gmra.mrb[0].mxu0 %v261
    %v1084 = vpop.f32.mrb[0].mxu0
    %v1085 = vadd.f32 %v732, %v1084
    %v1086 = vpop.f32.mrb[0].mxu0
    %v1087 = vadd.f32 %v734, %v1086
    %v1088 = vpop.f32.mrb[0].mxu0
    %v1089 = vadd.f32 %v736, %v1088
    %v1090 = vpop.f32.mrb[0].mxu0
    %v1091 = vadd.f32 %v738, %v1090
    %1092 = vmatprep.mubr.bf16.mxu0 0
    %1093 = vmatmul.mubr.bf16.gmra.mrb[0].mxu0 %v264
    %v1094 = vpop.f32.mrb[0].mxu0
    %v1095 = vadd.f32 %v742, %v1094
    %v1096 = vpop.f32.mrb[0].mxu0
    %v1097 = vadd.f32 %v744, %v1096
    %v1098 = vpop.f32.mrb[0].mxu0
    %v1099 = vadd.f32 %v746, %v1098
    %v1100 = vpop.f32.mrb[0].mxu0
    %v1101 = vadd.f32 %v748, %v1100
    %1102 = vmatprep.mubr.bf16.mxu0 0
    %1103 = vmatmul.mubr.bf16.gmra.mrb[0].mxu0 %v267
    %v1104 = vpop.f32.mrb[0].mxu0
    %v1105 = vadd.f32 %v752, %v1104
    %v1106 = vpop.f32.mrb[0].mxu0
    %v1107 = vadd.f32 %v754, %v1106
    %v1108 = vpop.f32.mrb[0].mxu0
    %v1109 = vadd.f32 %v756, %v1108
    %v1110 = vpop.f32.mrb[0].mxu0
    %v1111 = vadd.f32 %v758, %v1110
    %1112 = vmatprep.mubr.bf16.mxu0 0
    %1113 = vmatmul.mubr.bf16.gmra.mrb[0].mxu0 %v270
    %v1114 = vpop.f32.mrb[0].mxu0
    %v1115 = vadd.f32 %v762, %v1114
    %v1116 = vpop.f32.mrb[0].mxu0
    %v1117 = vadd.f32 %v764, %v1116
    %v1118 = vpop.f32.mrb[0].mxu0
    %v1119 = vadd.f32 %v766, %v1118
    %v1120 = vpop.f32.mrb[0].mxu0
    %v1121 = vadd.f32 %v768, %v1120
    %1122 = vmatprep.mubr.bf16.mxu0 0
    %1123 = vmatmul.mubr.bf16.gmra.mrb[0].mxu0 %v273
    %v1124 = vpop.f32.mrb[0].mxu0
    %v1125 = vadd.f32 %v772, %v1124
    %v1126 = vpop.f32.mrb[0].mxu0
    %v1127 = vadd.f32 %v774, %v1126
    %v1128 = vpop.f32.mrb[0].mxu0
    %v1129 = vadd.f32 %v776, %v1128
    %v1130 = vpop.f32.mrb[0].mxu0
    %v1131 = vadd.f32 %v778, %v1130
    %1132 = vmatprep.mubr.bf16.mxu0 0
    %1133 = vmatmul.mubr.bf16.gmra.mrb[0].mxu0 %v276
    %v1134 = vpop.f32.mrb[0].mxu0
    %v1135 = vadd.f32 %v782, %v1134
    %v1136 = vpop.f32.mrb[0].mxu0
    %v1137 = vadd.f32 %v784, %v1136
    %v1138 = vpop.f32.mrb[0].mxu0
    %v1139 = vadd.f32 %v786, %v1138
    %v1140 = vpop.f32.mrb[0].mxu0
    %v1141 = vadd.f32 %v788, %v1140
    %1142 = vmatprep.mubr.bf16.mxu0 0
    %1143 = vmatmul.mubr.bf16.gmra.mrb[0].mxu0 %v279
    %v1144 = vpop.f32.mrb[0].mxu0
    %v1145 = vadd.f32 %v792, %v1144
    %v1146 = vpop.f32.mrb[0].mxu0
    %v1147 = vadd.f32 %v794, %v1146
    %v1148 = vpop.f32.mrb[0].mxu0
    %v1149 = vadd.f32 %v796, %v1148
    %v1150 = vpop.f32.mrb[0].mxu0
    %v1151 = vadd.f32 %v798, %v1150
    %1152 = vmatprep.mubr.bf16.mxu0 0
    %1153 = vmatmul.mubr.bf16.gmra.mrb[0].mxu0 %v282
    %v1154 = vpop.f32.mrb[0].mxu0
    %v1155 = vadd.f32 %v802, %v1154
    %v1156 = vpop.f32.mrb[0].mxu0
    %v1157 = vadd.f32 %v804, %v1156
    %v1158 = vpop.f32.mrb[0].mxu0
    %v1159 = vadd.f32 %v806, %v1158
    %v1160 = vpop.f32.mrb[0].mxu0
    %v1161 = vadd.f32 %v808, %v1160
    %1162 = vmatprep.mubr.bf16.mxu0 0
    %1163 = vmatmul.mubr.bf16.gmra.mrb[0].mxu0 %v285
    %v1164 = vpop.f32.mrb[0].mxu0
    %v1165 = vadd.f32 %v812, %v1164
    %v1166 = vpop.f32.mrb[0].mxu0
    %v1167 = vadd.f32 %v814, %v1166
    %v1168 = vpop.f32.mrb[0].mxu0
    %v1169 = vadd.f32 %v816, %v1168
    %v1170 = vpop.f32.mrb[0].mxu0
    %v1171 = vadd.f32 %v818, %v1170
    %1172 = vmatprep.mubr.bf16.mxu0 0
    %1173 = vmatmul.mubr.bf16.gmra.mrb[0].mxu0 %v288
    %v1174 = vpop.f32.mrb[0].mxu0
    %v1175 = vadd.f32 %v822, %v1174
    %v1176 = vpop.f32.mrb[0].mxu0
    %v1177 = vadd.f32 %v824, %v1176
    %v1178 = vpop.f32.mrb[0].mxu0
    %v1179 = vadd.f32 %v826, %v1178
    %v1180 = vpop.f32.mrb[0].mxu0
    %v1181 = vadd.f32 %v828, %v1180
    %1182 = vmatprep.mubr.bf16.mxu0 0
    %1183 = vmatmul.mubr.bf16.gmra.mrb[0].mxu0 %v291
    %v1184 = vpop.f32.mrb[0].mxu0
    %v1185 = vadd.f32 %v832, %v1184
    %v1186 = vpop.f32.mrb[0].mxu0
    %v1187 = vadd.f32 %v834, %v1186
    %v1188 = vpop.f32.mrb[0].mxu0
    %v1189 = vadd.f32 %v836, %v1188
    %v1190 = vpop.f32.mrb[0].mxu0
    %v1191 = vadd.f32 %v838, %v1190
    %1192 = vmatprep.mubr.bf16.mxu0 0
    %1193 = vmatmul.mubr.bf16.gmra.mrb[0].mxu0 %v294
    %v1194 = vpop.f32.mrb[0].mxu0
    %v1195 = vadd.f32 %v842, %v1194
    %v1196 = vpop.f32.mrb[0].mxu0
    %v1197 = vadd.f32 %v844, %v1196
    %v1198 = vpop.f32.mrb[0].mxu0
    %v1199 = vadd.f32 %v846, %v1198
    %v1200 = vpop.f32.mrb[0].mxu0
    %v1201 = vadd.f32 %v848, %v1200
    %1202 = vmatprep.mubr.bf16.mxu0 0
    %1203 = vmatmul.mubr.bf16.gmra.mrb[0].mxu0 %v297
    %v1204 = vpop.f32.mrb[0].mxu0
    %v1205 = vadd.f32 %v852, %v1204
    %v1206 = vpop.f32.mrb[0].mxu0
    %v1207 = vadd.f32 %v854, %v1206
    %v1208 = vpop.f32.mrb[0].mxu0
    %v1209 = vadd.f32 %v856, %v1208
    %v1210 = vpop.f32.mrb[0].mxu0
    %v1211 = vadd.f32 %v858, %v1210
    %1212 = vmatprep.mubr.bf16.mxu0 0
    %1213 = vmatmul.mubr.bf16.gmra.mrb[0].mxu0 %v300
    %v1214 = vpop.f32.mrb[0].mxu0
    %v1215 = vadd.f32 %v862, %v1214
    %v1216 = vpop.f32.mrb[0].mxu0
    %v1217 = vadd.f32 %v864, %v1216
    %v1218 = vpop.f32.mrb[0].mxu0
    %v1219 = vadd.f32 %v866, %v1218
    %v1220 = vpop.f32.mrb[0].mxu0
    %v1221 = vadd.f32 %v868, %v1220
    %1222 = vmatprep.mubr.bf16.mxu0 0
    %1223 = vmatmul.mubr.bf16.gmra.mrb[0].mxu0 %v303
    %v1224 = vpop.f32.mrb[0].mxu0
    %v1225 = vadd.f32 %v872, %v1224
    %v1226 = vpop.f32.mrb[0].mxu0
    %v1227 = vadd.f32 %v874, %v1226
    %v1228 = vpop.f32.mrb[0].mxu0
    %v1229 = vadd.f32 %v876, %v1228
    %v1230 = vpop.f32.mrb[0].mxu0
    %v1231 = vadd.f32 %v878, %v1230
    %1232 = vmatprep.mubr.bf16.mxu0 0
    %1233 = vmatmul.mubr.bf16.gmra.mrb[0].mxu0 %v306
    %v1234 = vpop.f32.mrb[0].mxu0
    %v1235 = vadd.f32 %v882, %v1234
    %v1236 = vpop.f32.mrb[0].mxu0
    %v1237 = vadd.f32 %v884, %v1236
    %v1238 = vpop.f32.mrb[0].mxu0
    %v1239 = vadd.f32 %v886, %v1238
    %v1240 = vpop.f32.mrb[0].mxu0
    %v1241 = vadd.f32 %v888, %v1240
    %1242 = vmatprep.mubr.bf16.mxu0 0
    %1243 = vmatmul.mubr.bf16.gmra.mrb[0].mxu0 %v309
    %v1244 = vpop.f32.mrb[0].mxu0
    %v1245 = vadd.f32 %v892, %v1244
    %v1246 = vpop.f32.mrb[0].mxu0
    %v1247 = vadd.f32 %v894, %v1246
    %v1248 = vpop.f32.mrb[0].mxu0
    %v1249 = vadd.f32 %v896, %v1248
    %v1250 = vpop.f32.mrb[0].mxu0
    %v1251 = vadd.f32 %v898, %v1250
    %1252 = vmatprep.mubr.bf16.mxu0 0
    %1253 = vmatmul.mubr.bf16.gmra.mrb[0].mxu0 %v312
    %v1254 = vpop.f32.mrb[0].mxu0
    %v1255 = vadd.f32 %v902, %v1254
    %v1256 = vpop.f32.mrb[0].mxu0
    %v1257 = vadd.f32 %v904, %v1256
    %v1258 = vpop.f32.mrb[0].mxu0
    %v1259 = vadd.f32 %v906, %v1258
    %v1260 = vpop.f32.mrb[0].mxu0
    %v1261 = vadd.f32 %v908, %v1260
    %1262 = vmatprep.mubr.bf16.mxu0 0
    %1263 = vmatmul.mubr.bf16.gmra.mrb[0].mxu0 %v315
    %v1264 = vpop.f32.mrb[0].mxu0
    %v1265 = vadd.f32 %v912, %v1264
    %v1266 = vpop.f32.mrb[0].mxu0
    %v1267 = vadd.f32 %v914, %v1266
    %v1268 = vpop.f32.mrb[0].mxu0
    %v1269 = vadd.f32 %v916, %v1268
    %v1270 = vpop.f32.mrb[0].mxu0
    %v1271 = vadd.f32 %v918, %v1270
    %1272 = vmatprep.mubr.bf16.mxu0 0
    %1273 = vmatmul.mubr.bf16.gmra.mrb[0].mxu0 %v318
    %v1274 = vpop.f32.mrb[0].mxu0
    %v1275 = vadd.f32 %v922, %v1274
    %v1276 = vpop.f32.mrb[0].mxu0
    %v1277 = vadd.f32 %v924, %v1276
    %v1278 = vpop.f32.mrb[0].mxu0
    %v1279 = vadd.f32 %v926, %v1278
    %v1280 = vpop.f32.mrb[0].mxu0
    %v1281 = vadd.f32 %v928, %v1280
    %1282 = vmatprep.mubr.bf16.mxu0 0
    %1283 = vmatmul.mubr.bf16.gmra.mrb[0].mxu0 %v321
    %v1284 = vpop.f32.mrb[0].mxu0
    %v1285 = vadd.f32 %v932, %v1284
    %v1286 = vpop.f32.mrb[0].mxu0
    %v1287 = vadd.f32 %v934, %v1286
    %v1288 = vpop.f32.mrb[0].mxu0
    %v1289 = vadd.f32 %v936, %v1288
    %v1290 = vpop.f32.mrb[0].mxu0
    %v1291 = vadd.f32 %v938, %v1290
    %1292 = vmatprep.mubr.bf16.mxu0 0
    %1293 = vmatmul.mubr.bf16.gmra.mrb[0].mxu0 %v324
    %v1294 = vpop.f32.mrb[0].mxu0
    %v1295 = vadd.f32 %v942, %v1294
    %v1296 = vpop.f32.mrb[0].mxu0
    %v1297 = vadd.f32 %v944, %v1296
    %v1298 = vpop.f32.mrb[0].mxu0
    %v1299 = vadd.f32 %v946, %v1298
    %v1300 = vpop.f32.mrb[0].mxu0
    %v1301 = vadd.f32 %v948, %v1300
    %1302 = vmatprep.mubr.bf16.mxu0 0
    %1303 = vmatmul.mubr.bf16.gmra.mrb[0].mxu0 %v327
    %v1304 = vpop.f32.mrb[0].mxu0
    %v1305 = vadd.f32 %v952, %v1304
    %v1306 = vpop.f32.mrb[0].mxu0
    %v1307 = vadd.f32 %v954, %v1306
    %v1308 = vpop.f32.mrb[0].mxu0
    %v1309 = vadd.f32 %v956, %v1308
    %v1310 = vpop.f32.mrb[0].mxu0
    %v1311 = vadd.f32 %v958, %v1310
    %1312 = vmatprep.mubr.bf16.mxu0 0
    %1313 = vmatmul.mubr.bf16.gmra.mrb[0].mxu0 %v330
    %v1314 = vpop.f32.mrb[0].mxu0
    %v1315 = vadd.f32 %v962, %v1314
    %v1316 = vpop.f32.mrb[0].mxu0
    %v1317 = vadd.f32 %v964, %v1316
    %v1318 = vpop.f32.mrb[0].mxu0
    %v1319 = vadd.f32 %v966, %v1318
    %v1320 = vpop.f32.mrb[0].mxu0
    %v1321 = vadd.f32 %v968, %v1320
    %1322 = vmatprep.mubr.bf16.mxu0 0
    %1323 = vmatmul.mubr.bf16.gmra.mrb[0].mxu0 %v333
    %v1324 = vpop.f32.mrb[0].mxu0
    %v1325 = vadd.f32 %v972, %v1324
    %v1326 = vpop.f32.mrb[0].mxu0
    %v1327 = vadd.f32 %v974, %v1326
    %v1328 = vpop.f32.mrb[0].mxu0
    %v1329 = vadd.f32 %v976, %v1328
    %v1330 = vpop.f32.mrb[0].mxu0
    %v1331 = vadd.f32 %v978, %v1330
    %1332 = vmatprep.mubr.bf16.mxu0 0
    %1333 = vmatmul.mubr.bf16.gmra.mrb[0].mxu0 %v336
    %v1334 = vpop.f32.mrb[0].mxu0
    %v1335 = vadd.f32 %v982, %v1334
    %v1336 = vpop.f32.mrb[0].mxu0
    %v1337 = vadd.f32 %v984, %v1336
    %v1338 = vpop.f32.mrb[0].mxu0
    %v1339 = vadd.f32 %v986, %v1338
    %v1340 = vpop.f32.mrb[0].mxu0
    %v1341 = vadd.f32 %v988, %v1340
    %1342 = vdwg.mxu0
    %v1343 = vmax.f32 %v1025, 0.0
    %v1344 = vmax.f32 %v1027, 0.0
    %v1345 = vmax.f32 %v1029, 0.0
    %v1346 = vmax.f32 %v1031, 0.0
    %v1347 = vmax.f32 %v1035, 0.0
    %v1348 = vmax.f32 %v1037, 0.0
    %v1349 = vmax.f32 %v1039, 0.0
    %v1350 = vmax.f32 %v1041, 0.0
    %v1351 = vmax.f32 %v1045, 0.0
    %v1352 = vmax.f32 %v1047, 0.0
    %v1353 = vmax.f32 %v1049, 0.0
    %v1354 = vmax.f32 %v1051, 0.0
    %v1355 = vmax.f32 %v1055, 0.0
    %v1356 = vmax.f32 %v1057, 0.0
    %v1357 = vmax.f32 %v1059, 0.0
    %v1358 = vmax.f32 %v1061, 0.0
    %v1359 = vmax.f32 %v1065, 0.0
    %v1360 = vmax.f32 %v1067, 0.0
    %v1361 = vmax.f32 %v1069, 0.0
    %v1362 = vmax.f32 %v1071, 0.0
    %v1363 = vmax.f32 %v1075, 0.0
    %v1364 = vmax.f32 %v1077, 0.0
    %v1365 = vmax.f32 %v1079, 0.0
    %v1366 = vmax.f32 %v1081, 0.0
    %v1367 = vmax.f32 %v1085, 0.0
    %v1368 = vmax.f32 %v1087, 0.0
    %v1369 = vmax.f32 %v1089, 0.0
    %v1370 = vmax.f32 %v1091, 0.0
    %v1371 = vmax.f32 %v1095, 0.0
    %v1372 = vmax.f32 %v1097, 0.0
    %v1373 = vmax.f32 %v1099, 0.0
    %v1374 = vmax.f32 %v1101, 0.0
    %v1375 = vmax.f32 %v1105, 0.0
    %v1376 = vmax.f32 %v1107, 0.0
    %v1377 = vmax.f32 %v1109, 0.0
    %v1378 = vmax.f32 %v1111, 0.0
    %v1379 = vmax.f32 %v1115, 0.0
    %v1380 = vmax.f32 %v1117, 0.0
    %v1381 = vmax.f32 %v1119, 0.0
    %v1382 = vmax.f32 %v1121, 0.0
    %v1383 = vmax.f32 %v1125, 0.0
    %v1384 = vmax.f32 %v1127, 0.0
    %v1385 = vmax.f32 %v1129, 0.0
    %v1386 = vmax.f32 %v1131, 0.0
    %v1387 = vmax.f32 %v1135, 0.0
    %v1388 = vmax.f32 %v1137, 0.0
    %v1389 = vmax.f32 %v1139, 0.0
    %v1390 = vmax.f32 %v1141, 0.0
    %v1391 = vmax.f32 %v1145, 0.0
    %v1392 = vmax.f32 %v1147, 0.0
    %v1393 = vmax.f32 %v1149, 0.0
    %v1394 = vmax.f32 %v1151, 0.0
    %v1395 = vmax.f32 %v1155, 0.0
    %v1396 = vmax.f32 %v1157, 0.0
    %v1397 = vmax.f32 %v1159, 0.0
    %v1398 = vmax.f32 %v1161, 0.0
    %v1399 = vmax.f32 %v1165, 0.0
    %v1400 = vmax.f32 %v1167, 0.0
    %v1401 = vmax.f32 %v1169, 0.0
    %v1402 = vmax.f32 %v1171, 0.0
    %v1403 = vmax.f32 %v1175, 0.0
    %v1404 = vmax.f32 %v1177, 0.0
    %v1405 = vmax.f32 %v1179, 0.0
    %v1406 = vmax.f32 %v1181, 0.0
    %v1407 = vmax.f32 %v1185, 0.0
    %v1408 = vmax.f32 %v1187, 0.0
    %v1409 = vmax.f32 %v1189, 0.0
    %v1410 = vmax.f32 %v1191, 0.0
    %v1411 = vmax.f32 %v1195, 0.0
    %v1412 = vmax.f32 %v1197, 0.0
    %v1413 = vmax.f32 %v1199, 0.0
    %v1414 = vmax.f32 %v1201, 0.0
    %v1415 = vmax.f32 %v1205, 0.0
    %v1416 = vmax.f32 %v1207, 0.0
    %v1417 = vmax.f32 %v1209, 0.0
    %v1418 = vmax.f32 %v1211, 0.0
    %v1419 = vmax.f32 %v1215, 0.0
    %v1420 = vmax.f32 %v1217, 0.0
    %v1421 = vmax.f32 %v1219, 0.0
    %v1422 = vmax.f32 %v1221, 0.0
    %v1423 = vmax.f32 %v1225, 0.0
    %v1424 = vmax.f32 %v1227, 0.0
    %v1425 = vmax.f32 %v1229, 0.0
    %v1426 = vmax.f32 %v1231, 0.0
    %v1427 = vmax.f32 %v1235, 0.0
    %v1428 = vmax.f32 %v1237, 0.0
    %v1429 = vmax.f32 %v1239, 0.0
    %v1430 = vmax.f32 %v1241, 0.0
    %v1431 = vmax.f32 %v1245, 0.0
    %v1432 = vmax.f32 %v1247, 0.0
    %v1433 = vmax.f32 %v1249, 0.0
    %v1434 = vmax.f32 %v1251, 0.0
    %v1435 = vmax.f32 %v1255, 0.0
    %v1436 = vmax.f32 %v1257, 0.0
    %v1437 = vmax.f32 %v1259, 0.0
    %v1438 = vmax.f32 %v1261, 0.0
    %v1439 = vmax.f32 %v1265, 0.0
    %v1440 = vmax.f32 %v1267, 0.0
    %v1441 = vmax.f32 %v1269, 0.0
    %v1442 = vmax.f32 %v1271, 0.0
    %v1443 = vmax.f32 %v1275, 0.0
    %v1444 = vmax.f32 %v1277, 0.0
    %v1445 = vmax.f32 %v1279, 0.0
    %v1446 = vmax.f32 %v1281, 0.0
    %v1447 = vmax.f32 %v1285, 0.0
    %v1448 = vmax.f32 %v1287, 0.0
    %v1449 = vmax.f32 %v1289, 0.0
    %v1450 = vmax.f32 %v1291, 0.0
    %v1451 = vmax.f32 %v1295, 0.0
    %v1452 = vmax.f32 %v1297, 0.0
    %v1453 = vmax.f32 %v1299, 0.0
    %v1454 = vmax.f32 %v1301, 0.0
    %v1455 = vmax.f32 %v1305, 0.0
    %v1456 = vmax.f32 %v1307, 0.0
    %v1457 = vmax.f32 %v1309, 0.0
    %v1458 = vmax.f32 %v1311, 0.0
    %v1459 = vmax.f32 %v1315, 0.0
    %v1460 = vmax.f32 %v1317, 0.0
    %v1461 = vmax.f32 %v1319, 0.0
    %v1462 = vmax.f32 %v1321, 0.0
    %v1463 = vmax.f32 %v1325, 0.0
    %v1464 = vmax.f32 %v1327, 0.0
    %v1465 = vmax.f32 %v1329, 0.0
    %v1466 = vmax.f32 %v1331, 0.0
    %v1467 = vmax.f32 %v1335, 0.0
    %v1468 = vmax.f32 %v1337, 0.0
    %v1469 = vmax.f32 %v1339, 0.0
    %v1470 = vmax.f32 %v1341, 0.0
    %v1471 = vpack.c.bf16 %v1345, %v1343
    %v1472 = vpack.c.bf16 %v1346, %v1344
    %v1473 = vpack.c.bf16 %v1349, %v1347
    %v1474 = vpack.c.bf16 %v1350, %v1348
    %v1475 = vpack.c.bf16 %v1353, %v1351
    %v1476 = vpack.c.bf16 %v1354, %v1352
    %v1477 = vpack.c.bf16 %v1357, %v1355
    %v1478 = vpack.c.bf16 %v1358, %v1356
    %v1479 = vpack.c.bf16 %v1361, %v1359
    %v1480 = vpack.c.bf16 %v1362, %v1360
    %v1481 = vpack.c.bf16 %v1365, %v1363
    %v1482 = vpack.c.bf16 %v1366, %v1364
    %v1483 = vpack.c.bf16 %v1369, %v1367
    %v1484 = vpack.c.bf16 %v1370, %v1368
    %v1485 = vpack.c.bf16 %v1373, %v1371
    %v1486 = vpack.c.bf16 %v1374, %v1372
    %v1487 = vpack.c.bf16 %v1377, %v1375
    %v1488 = vpack.c.bf16 %v1378, %v1376
    %v1489 = vpack.c.bf16 %v1381, %v1379
    %v1490 = vpack.c.bf16 %v1382, %v1380
    %v1491 = vpack.c.bf16 %v1385, %v1383
    %v1492 = vpack.c.bf16 %v1386, %v1384
    %v1493 = vpack.c.bf16 %v1389, %v1387
    %v1494 = vpack.c.bf16 %v1390, %v1388
    %v1495 = vpack.c.bf16 %v1393, %v1391
    %v1496 = vpack.c.bf16 %v1394, %v1392
    %v1497 = vpack.c.bf16 %v1397, %v1395
    %v1498 = vpack.c.bf16 %v1398, %v1396
    %v1499 = vpack.c.bf16 %v1401, %v1399
    %v1500 = vpack.c.bf16 %v1402, %v1400
    %v1501 = vpack.c.bf16 %v1405, %v1403
    %v1502 = vpack.c.bf16 %v1406, %v1404
    %v1503 = vpack.c.bf16 %v1409, %v1407
    %v1504 = vpack.c.bf16 %v1410, %v1408
    %v1505 = vpack.c.bf16 %v1413, %v1411
    %v1506 = vpack.c.bf16 %v1414, %v1412
    %v1507 = vpack.c.bf16 %v1417, %v1415
    %v1508 = vpack.c.bf16 %v1418, %v1416
    %v1509 = vpack.c.bf16 %v1421, %v1419
    %v1510 = vpack.c.bf16 %v1422, %v1420
    %v1511 = vpack.c.bf16 %v1425, %v1423
    %v1512 = vpack.c.bf16 %v1426, %v1424
    %v1513 = vpack.c.bf16 %v1429, %v1427
    %v1514 = vpack.c.bf16 %v1430, %v1428
    %v1515 = vpack.c.bf16 %v1433, %v1431
    %v1516 = vpack.c.bf16 %v1434, %v1432
    %v1517 = vpack.c.bf16 %v1437, %v1435
    %v1518 = vpack.c.bf16 %v1438, %v1436
    %v1519 = vpack.c.bf16 %v1441, %v1439
    %v1520 = vpack.c.bf16 %v1442, %v1440
    %v1521 = vpack.c.bf16 %v1445, %v1443
    %v1522 = vpack.c.bf16 %v1446, %v1444
    %v1523 = vpack.c.bf16 %v1449, %v1447
    %v1524 = vpack.c.bf16 %v1450, %v1448
    %v1525 = vpack.c.bf16 %v1453, %v1451
    %v1526 = vpack.c.bf16 %v1454, %v1452
    %v1527 = vpack.c.bf16 %v1457, %v1455
    %v1528 = vpack.c.bf16 %v1458, %v1456
    %v1529 = vpack.c.bf16 %v1461, %v1459
    %v1530 = vpack.c.bf16 %v1462, %v1460
    %v1531 = vpack.c.bf16 %v1465, %v1463
    %v1532 = vpack.c.bf16 %v1466, %v1464
    %v1533 = vpack.c.bf16 %v1469, %v1467
    %v1534 = vpack.c.bf16 %v1470, %v1468
    %v1535 = vld [vmem:[%s3] sm:$0xf]
    %v1536 = vld [vmem:[%s3 + $0x4] sm:$0xf]
    %v1537 = vld [vmem:[%s3 + $0x8] sm:$0xf]
    %v1538 = vld [vmem:[%s3 + $0xc] sm:$0xf]
    %v1539 = vld [vmem:[%s3 + $0x10] sm:$0xf]
    %v1540 = vld [vmem:[%s3 + $0x14] sm:$0xf]
    %v1541 = vld [vmem:[%s3 + $0x18] sm:$0xf]
    %v1542 = vld [vmem:[%s3 + $0x1c] sm:$0xf]
    %v1543 = vld [vmem:[%s3 + $0x20] sm:$0xf]
    %v1544 = vld [vmem:[%s3 + $0x24] sm:$0xf]
    %v1545 = vld [vmem:[%s3 + $0x28] sm:$0xf]
    %v1546 = vld [vmem:[%s3 + $0x2c] sm:$0xf]
    %v1547 = vld [vmem:[%s3 + $0x30] sm:$0xf]
    %v1548 = vld [vmem:[%s3 + $0x34] sm:$0xf]
    %v1549 = vld [vmem:[%s3 + $0x38] sm:$0xf]
    %v1550 = vld [vmem:[%s3 + $0x3c] sm:$0xf]
    %v1551 = vld [vmem:[%s3 + $0x40] sm:$0xf]
    %v1552 = vld [vmem:[%s3 + $0x44] sm:$0xf]
    %v1553 = vld [vmem:[%s3 + $0x48] sm:$0xf]
    %v1554 = vld [vmem:[%s3 + $0x4c] sm:$0xf]
    %v1555 = vld [vmem:[%s3 + $0x50] sm:$0xf]
    %v1556 = vld [vmem:[%s3 + $0x54] sm:$0xf]
    %v1557 = vld [vmem:[%s3 + $0x58] sm:$0xf]
    %v1558 = vld [vmem:[%s3 + $0x5c] sm:$0xf]
    %v1559 = vld [vmem:[%s3 + $0x60] sm:$0xf]
    %v1560 = vld [vmem:[%s3 + $0x64] sm:$0xf]
    %v1561 = vld [vmem:[%s3 + $0x68] sm:$0xf]
    %v1562 = vld [vmem:[%s3 + $0x6c] sm:$0xf]
    %v1563 = vld [vmem:[%s3 + $0x70] sm:$0xf]
    %v1564 = vld [vmem:[%s3 + $0x74] sm:$0xf]
    %v1565 = vld [vmem:[%s3 + $0x78] sm:$0xf]
    %v1566 = vld [vmem:[%s3 + $0x7c] sm:$0xf]
    %v1567 = vld [vmem:[%s4] sm:$0x1]
    %v1569 = vlaneseq
    %v1570 = vshrl.u32 %v1569, 7
    %v1571 = vsub.s32 0, %v1570
    %v1572 = vrot.slane %v1567, %v1571
    %v1606 = vunpack.c.l.b16 %v1535
    %v1607 = vunpack.c.l.b16 %v1536
    %v1608 = vunpack.c.l.b16 %v1537
    %v1609 = vunpack.c.l.b16 %v1538
    %v1610 = vunpack.c.l.b16 %v1539
    %v1611 = vunpack.c.l.b16 %v1540
    %v1612 = vunpack.c.l.b16 %v1541
    %v1613 = vunpack.c.l.b16 %v1542
    %v1614 = vunpack.c.l.b16 %v1543
    %v1615 = vunpack.c.l.b16 %v1544
    %v1616 = vunpack.c.l.b16 %v1545
    %v1617 = vunpack.c.l.b16 %v1546
    %v1618 = vunpack.c.l.b16 %v1547
    %v1619 = vunpack.c.l.b16 %v1548
    %v1620 = vunpack.c.l.b16 %v1549
    %v1621 = vunpack.c.l.b16 %v1550
    %v1622 = vunpack.c.l.b16 %v1551
    %v1623 = vunpack.c.l.b16 %v1552
    %v1624 = vunpack.c.l.b16 %v1553
    %v1625 = vunpack.c.l.b16 %v1554
    %v1626 = vunpack.c.l.b16 %v1555
    %v1627 = vunpack.c.l.b16 %v1556
    %v1628 = vunpack.c.l.b16 %v1557
    %v1629 = vunpack.c.l.b16 %v1558
    %v1630 = vunpack.c.l.b16 %v1559
    %v1631 = vunpack.c.l.b16 %v1560
    %v1632 = vunpack.c.l.b16 %v1561
    %v1633 = vunpack.c.l.b16 %v1562
    %v1634 = vunpack.c.l.b16 %v1563
    %v1635 = vunpack.c.l.b16 %v1564
    %v1636 = vunpack.c.l.b16 %v1565
    %v1637 = vunpack.c.l.b16 %v1566
    %v1638 = vpack.c.b16 %v1607, %v1606
    %v1639 = vpack.c.b16 %v1609, %v1608
    %v1640 = vpack.c.b16 %v1611, %v1610
    %v1641 = vpack.c.b16 %v1613, %v1612
    %v1642 = vpack.c.b16 %v1615, %v1614
    %v1643 = vpack.c.b16 %v1617, %v1616
    %v1644 = vpack.c.b16 %v1619, %v1618
    %v1645 = vpack.c.b16 %v1621, %v1620
    %v1646 = vpack.c.b16 %v1623, %v1622
    %v1647 = vpack.c.b16 %v1625, %v1624
    %v1648 = vpack.c.b16 %v1627, %v1626
    %v1649 = vpack.c.b16 %v1629, %v1628
    %v1650 = vpack.c.b16 %v1631, %v1630
    %v1651 = vpack.c.b16 %v1633, %v1632
    %v1652 = vpack.c.b16 %v1635, %v1634
    %v1653 = vpack.c.b16 %v1637, %v1636
    %1670 = vmatprep.subr.bf16.mxu0 0
    %1671 = vmatpush1.bf16.msra.mxu0 %v1638
    %1672 = vmatprep.subr.bf16.mxu0 0
    %1673 = vmatpush1.bf16.msra.mxu0 %v1639
    %1674 = vmatprep.subr.bf16.mxu0 0
    %1675 = vmatpush1.bf16.msra.mxu0 %v1640
    %1676 = vmatprep.subr.bf16.mxu0 0
    %1677 = vmatpush1.bf16.msra.mxu0 %v1641
    %1678 = vmatprep.subr.bf16.mxu0 0
    %1679 = vmatpush1.bf16.msra.mxu0 %v1642
    %1680 = vmatprep.subr.bf16.mxu0 0
    %1681 = vmatpush1.bf16.msra.mxu0 %v1643
    %1682 = vmatprep.subr.bf16.mxu0 0
    %1683 = vmatpush1.bf16.msra.mxu0 %v1644
    %1684 = vmatprep.subr.bf16.mxu0 0
    %1685 = vmatpush1.bf16.msra.mxu0 %v1645
    %1686 = vmatprep.subr.bf16.mxu0 0
    %1687 = vmatpush1.bf16.msra.mxu0 %v1646
    %1688 = vmatprep.subr.bf16.mxu0 0
    %1689 = vmatpush1.bf16.msra.mxu0 %v1647
    %1690 = vmatprep.subr.bf16.mxu0 0
    %1691 = vmatpush1.bf16.msra.mxu0 %v1648
    %1692 = vmatprep.subr.bf16.mxu0 0
    %1693 = vmatpush1.bf16.msra.mxu0 %v1649
    %1694 = vmatprep.subr.bf16.mxu0 0
    %1695 = vmatpush1.bf16.msra.mxu0 %v1650
    %1696 = vmatprep.subr.bf16.mxu0 0
    %1697 = vmatpush1.bf16.msra.mxu0 %v1651
    %1698 = vmatprep.subr.bf16.mxu0 0
    %1699 = vmatpush1.bf16.msra.mxu0 %v1652
    %1700 = vmatprep.subr.bf16.mxu0 0
    %1701 = vmatpush1.bf16.msra.mxu0 %v1653
    %1702 = vmatprep.mubr.bf16.mxu0 %v1472
    %1703 = vmatmul.mubr.bf16.gmra.mrb[0].mxu0 %v1471
    %v1704 = vpop.f32.mrb[0].mxu0
    %v1705 = vadd.f32 %v1572, %v1704
    %v1706 = vpop.f32.mrb[0].mxu0
    %v1707 = vpop.f32.mrb[0].mxu0
    %v1708 = vadd.f32 %v1572, %v1707
    %v1709 = vpop.f32.mrb[0].mxu0
    %1710 = vmatprep.mubr.bf16.mxu0 %v1474
    %1711 = vmatmul.mubr.bf16.gmra.mrb[0].mxu0 %v1473
    %v1712 = vpop.f32.mrb[0].mxu0
    %v1713 = vadd.f32 %v1572, %v1712
    %v1714 = vpop.f32.mrb[0].mxu0
    %v1715 = vpop.f32.mrb[0].mxu0
    %v1716 = vadd.f32 %v1572, %v1715
    %v1717 = vpop.f32.mrb[0].mxu0
    %1718 = vmatprep.mubr.bf16.mxu0 %v1476
    %1719 = vmatmul.mubr.bf16.gmra.mrb[0].mxu0 %v1475
    %v1720 = vpop.f32.mrb[0].mxu0
    %v1721 = vadd.f32 %v1572, %v1720
    %v1722 = vpop.f32.mrb[0].mxu0
    %v1723 = vpop.f32.mrb[0].mxu0
    %v1724 = vadd.f32 %v1572, %v1723
    %v1725 = vpop.f32.mrb[0].mxu0
    %1726 = vmatprep.mubr.bf16.mxu0 %v1478
    %1727 = vmatmul.mubr.bf16.gmra.mrb[0].mxu0 %v1477
    %v1728 = vpop.f32.mrb[0].mxu0
    %v1729 = vadd.f32 %v1572, %v1728
    %v1730 = vpop.f32.mrb[0].mxu0
    %v1731 = vpop.f32.mrb[0].mxu0
    %v1732 = vadd.f32 %v1572, %v1731
    %v1733 = vpop.f32.mrb[0].mxu0
    %1734 = vmatprep.mubr.bf16.mxu0 %v1480
    %1735 = vmatmul.mubr.bf16.gmra.mrb[0].mxu0 %v1479
    %v1736 = vpop.f32.mrb[0].mxu0
    %v1737 = vadd.f32 %v1572, %v1736
    %v1738 = vpop.f32.mrb[0].mxu0
    %v1739 = vpop.f32.mrb[0].mxu0
    %v1740 = vadd.f32 %v1572, %v1739
    %v1741 = vpop.f32.mrb[0].mxu0
    %1742 = vmatprep.mubr.bf16.mxu0 %v1482
    %1743 = vmatmul.mubr.bf16.gmra.mrb[0].mxu0 %v1481
    %v1744 = vpop.f32.mrb[0].mxu0
    %v1745 = vadd.f32 %v1572, %v1744
    %v1746 = vpop.f32.mrb[0].mxu0
    %v1747 = vpop.f32.mrb[0].mxu0
    %v1748 = vadd.f32 %v1572, %v1747
    %v1749 = vpop.f32.mrb[0].mxu0
    %1750 = vmatprep.mubr.bf16.mxu0 %v1484
    %1751 = vmatmul.mubr.bf16.gmra.mrb[0].mxu0 %v1483
    %v1752 = vpop.f32.mrb[0].mxu0
    %v1753 = vadd.f32 %v1572, %v1752
    %v1754 = vpop.f32.mrb[0].mxu0
    %v1755 = vpop.f32.mrb[0].mxu0
    %v1756 = vadd.f32 %v1572, %v1755
    %v1757 = vpop.f32.mrb[0].mxu0
    %1758 = vmatprep.mubr.bf16.mxu0 %v1486
    %1759 = vmatmul.mubr.bf16.gmra.mrb[0].mxu0 %v1485
    %v1760 = vpop.f32.mrb[0].mxu0
    %v1761 = vadd.f32 %v1572, %v1760
    %v1762 = vpop.f32.mrb[0].mxu0
    %v1763 = vpop.f32.mrb[0].mxu0
    %v1764 = vadd.f32 %v1572, %v1763
    %v1765 = vpop.f32.mrb[0].mxu0
    %1766 = vmatprep.mubr.bf16.mxu0 %v1488
    %1767 = vmatmul.mubr.bf16.gmra.mrb[0].mxu0 %v1487
    %v1768 = vpop.f32.mrb[0].mxu0
    %v1769 = vadd.f32 %v1572, %v1768
    %v1770 = vpop.f32.mrb[0].mxu0
    %v1771 = vpop.f32.mrb[0].mxu0
    %v1772 = vadd.f32 %v1572, %v1771
    %v1773 = vpop.f32.mrb[0].mxu0
    %1774 = vmatprep.mubr.bf16.mxu0 %v1490
    %1775 = vmatmul.mubr.bf16.gmra.mrb[0].mxu0 %v1489
    %v1776 = vpop.f32.mrb[0].mxu0
    %v1777 = vadd.f32 %v1572, %v1776
    %v1778 = vpop.f32.mrb[0].mxu0
    %v1779 = vpop.f32.mrb[0].mxu0
    %v1780 = vadd.f32 %v1572, %v1779
    %v1781 = vpop.f32.mrb[0].mxu0
    %1782 = vmatprep.mubr.bf16.mxu0 %v1492
    %1783 = vmatmul.mubr.bf16.gmra.mrb[0].mxu0 %v1491
    %v1784 = vpop.f32.mrb[0].mxu0
    %v1785 = vadd.f32 %v1572, %v1784
    %v1786 = vpop.f32.mrb[0].mxu0
    %v1787 = vpop.f32.mrb[0].mxu0
    %v1788 = vadd.f32 %v1572, %v1787
    %v1789 = vpop.f32.mrb[0].mxu0
    %1790 = vmatprep.mubr.bf16.mxu0 %v1494
    %1791 = vmatmul.mubr.bf16.gmra.mrb[0].mxu0 %v1493
    %v1792 = vpop.f32.mrb[0].mxu0
    %v1793 = vadd.f32 %v1572, %v1792
    %v1794 = vpop.f32.mrb[0].mxu0
    %v1795 = vpop.f32.mrb[0].mxu0
    %v1796 = vadd.f32 %v1572, %v1795
    %v1797 = vpop.f32.mrb[0].mxu0
    %1798 = vmatprep.mubr.bf16.mxu0 %v1496
    %1799 = vmatmul.mubr.bf16.gmra.mrb[0].mxu0 %v1495
    %v1800 = vpop.f32.mrb[0].mxu0
    %v1801 = vadd.f32 %v1572, %v1800
    %v1802 = vpop.f32.mrb[0].mxu0
    %v1803 = vpop.f32.mrb[0].mxu0
    %v1804 = vadd.f32 %v1572, %v1803
    %v1805 = vpop.f32.mrb[0].mxu0
    %1806 = vmatprep.mubr.bf16.mxu0 %v1498
    %1807 = vmatmul.mubr.bf16.gmra.mrb[0].mxu0 %v1497
    %v1808 = vpop.f32.mrb[0].mxu0
    %v1809 = vadd.f32 %v1572, %v1808
    %v1810 = vpop.f32.mrb[0].mxu0
    %v1811 = vpop.f32.mrb[0].mxu0
    %v1812 = vadd.f32 %v1572, %v1811
    %v1813 = vpop.f32.mrb[0].mxu0
    %1814 = vmatprep.mubr.bf16.mxu0 %v1500
    %1815 = vmatmul.mubr.bf16.gmra.mrb[0].mxu0 %v1499
    %v1816 = vpop.f32.mrb[0].mxu0
    %v1817 = vadd.f32 %v1572, %v1816
    %v1818 = vpop.f32.mrb[0].mxu0
    %v1819 = vpop.f32.mrb[0].mxu0
    %v1820 = vadd.f32 %v1572, %v1819
    %v1821 = vpop.f32.mrb[0].mxu0
    %1822 = vmatprep.mubr.bf16.mxu0 %v1502
    %1823 = vmatmul.mubr.bf16.gmra.mrb[0].mxu0 %v1501
    %v1824 = vpop.f32.mrb[0].mxu0
    %v1825 = vadd.f32 %v1572, %v1824
    %v1826 = vpop.f32.mrb[0].mxu0
    %v1827 = vpop.f32.mrb[0].mxu0
    %v1828 = vadd.f32 %v1572, %v1827
    %v1829 = vpop.f32.mrb[0].mxu0
    %1830 = vmatprep.mubr.bf16.mxu0 %v1504
    %1831 = vmatmul.mubr.bf16.gmra.mrb[0].mxu0 %v1503
    %v1832 = vpop.f32.mrb[0].mxu0
    %v1833 = vadd.f32 %v1572, %v1832
    %v1834 = vpop.f32.mrb[0].mxu0
    %v1835 = vpop.f32.mrb[0].mxu0
    %v1836 = vadd.f32 %v1572, %v1835
    %v1837 = vpop.f32.mrb[0].mxu0
    %1838 = vmatprep.mubr.bf16.mxu0 %v1506
    %1839 = vmatmul.mubr.bf16.gmra.mrb[0].mxu0 %v1505
    %v1840 = vpop.f32.mrb[0].mxu0
    %v1841 = vadd.f32 %v1572, %v1840
    %v1842 = vpop.f32.mrb[0].mxu0
    %v1843 = vpop.f32.mrb[0].mxu0
    %v1844 = vadd.f32 %v1572, %v1843
    %v1845 = vpop.f32.mrb[0].mxu0
    %1846 = vmatprep.mubr.bf16.mxu0 %v1508
    %1847 = vmatmul.mubr.bf16.gmra.mrb[0].mxu0 %v1507
    %v1848 = vpop.f32.mrb[0].mxu0
    %v1849 = vadd.f32 %v1572, %v1848
    %v1850 = vpop.f32.mrb[0].mxu0
    %v1851 = vpop.f32.mrb[0].mxu0
    %v1852 = vadd.f32 %v1572, %v1851
    %v1853 = vpop.f32.mrb[0].mxu0
    %1854 = vmatprep.mubr.bf16.mxu0 %v1510
    %1855 = vmatmul.mubr.bf16.gmra.mrb[0].mxu0 %v1509
    %v1856 = vpop.f32.mrb[0].mxu0
    %v1857 = vadd.f32 %v1572, %v1856
    %v1858 = vpop.f32.mrb[0].mxu0
    %v1859 = vpop.f32.mrb[0].mxu0
    %v1860 = vadd.f32 %v1572, %v1859
    %v1861 = vpop.f32.mrb[0].mxu0
    %1862 = vmatprep.mubr.bf16.mxu0 %v1512
    %1863 = vmatmul.mubr.bf16.gmra.mrb[0].mxu0 %v1511
    %v1864 = vpop.f32.mrb[0].mxu0
    %v1865 = vadd.f32 %v1572, %v1864
    %v1866 = vpop.f32.mrb[0].mxu0
    %v1867 = vpop.f32.mrb[0].mxu0
    %v1868 = vadd.f32 %v1572, %v1867
    %v1869 = vpop.f32.mrb[0].mxu0
    %1870 = vmatprep.mubr.bf16.mxu0 %v1514
    %1871 = vmatmul.mubr.bf16.gmra.mrb[0].mxu0 %v1513
    %v1872 = vpop.f32.mrb[0].mxu0
    %v1873 = vadd.f32 %v1572, %v1872
    %v1874 = vpop.f32.mrb[0].mxu0
    %v1875 = vpop.f32.mrb[0].mxu0
    %v1876 = vadd.f32 %v1572, %v1875
    %v1877 = vpop.f32.mrb[0].mxu0
    %1878 = vmatprep.mubr.bf16.mxu0 %v1516
    %1879 = vmatmul.mubr.bf16.gmra.mrb[0].mxu0 %v1515
    %v1880 = vpop.f32.mrb[0].mxu0
    %v1881 = vadd.f32 %v1572, %v1880
    %v1882 = vpop.f32.mrb[0].mxu0
    %v1883 = vpop.f32.mrb[0].mxu0
    %v1884 = vadd.f32 %v1572, %v1883
    %v1885 = vpop.f32.mrb[0].mxu0
    %1886 = vmatprep.mubr.bf16.mxu0 %v1518
    %1887 = vmatmul.mubr.bf16.gmra.mrb[0].mxu0 %v1517
    %v1888 = vpop.f32.mrb[0].mxu0
    %v1889 = vadd.f32 %v1572, %v1888
    %v1890 = vpop.f32.mrb[0].mxu0
    %v1891 = vpop.f32.mrb[0].mxu0
    %v1892 = vadd.f32 %v1572, %v1891
    %v1893 = vpop.f32.mrb[0].mxu0
    %1894 = vmatprep.mubr.bf16.mxu0 %v1520
    %1895 = vmatmul.mubr.bf16.gmra.mrb[0].mxu0 %v1519
    %v1896 = vpop.f32.mrb[0].mxu0
    %v1897 = vadd.f32 %v1572, %v1896
    %v1898 = vpop.f32.mrb[0].mxu0
    %v1899 = vpop.f32.mrb[0].mxu0
    %v1900 = vadd.f32 %v1572, %v1899
    %v1901 = vpop.f32.mrb[0].mxu0
    %1902 = vmatprep.mubr.bf16.mxu0 %v1522
    %1903 = vmatmul.mubr.bf16.gmra.mrb[0].mxu0 %v1521
    %v1904 = vpop.f32.mrb[0].mxu0
    %v1905 = vadd.f32 %v1572, %v1904
    %v1906 = vpop.f32.mrb[0].mxu0
    %v1907 = vpop.f32.mrb[0].mxu0
    %v1908 = vadd.f32 %v1572, %v1907
    %v1909 = vpop.f32.mrb[0].mxu0
    %1910 = vmatprep.mubr.bf16.mxu0 %v1524
    %1911 = vmatmul.mubr.bf16.gmra.mrb[0].mxu0 %v1523
    %v1912 = vpop.f32.mrb[0].mxu0
    %v1913 = vadd.f32 %v1572, %v1912
    %v1914 = vpop.f32.mrb[0].mxu0
    %v1915 = vpop.f32.mrb[0].mxu0
    %v1916 = vadd.f32 %v1572, %v1915
    %v1917 = vpop.f32.mrb[0].mxu0
    %1918 = vmatprep.mubr.bf16.mxu0 %v1526
    %1919 = vmatmul.mubr.bf16.gmra.mrb[0].mxu0 %v1525
    %v1920 = vpop.f32.mrb[0].mxu0
    %v1921 = vadd.f32 %v1572, %v1920
    %v1922 = vpop.f32.mrb[0].mxu0
    %v1923 = vpop.f32.mrb[0].mxu0
    %v1924 = vadd.f32 %v1572, %v1923
    %v1925 = vpop.f32.mrb[0].mxu0
    %1926 = vmatprep.mubr.bf16.mxu0 %v1528
    %1927 = vmatmul.mubr.bf16.gmra.mrb[0].mxu0 %v1527
    %v1928 = vpop.f32.mrb[0].mxu0
    %v1929 = vadd.f32 %v1572, %v1928
    %v1930 = vpop.f32.mrb[0].mxu0
    %v1931 = vpop.f32.mrb[0].mxu0
    %v1932 = vadd.f32 %v1572, %v1931
    %v1933 = vpop.f32.mrb[0].mxu0
    %1934 = vmatprep.mubr.bf16.mxu0 %v1530
    %1935 = vmatmul.mubr.bf16.gmra.mrb[0].mxu0 %v1529
    %v1936 = vpop.f32.mrb[0].mxu0
    %v1937 = vadd.f32 %v1572, %v1936
    %v1938 = vpop.f32.mrb[0].mxu0
    %v1939 = vpop.f32.mrb[0].mxu0
    %v1940 = vadd.f32 %v1572, %v1939
    %v1941 = vpop.f32.mrb[0].mxu0
    %1942 = vmatprep.mubr.bf16.mxu0 %v1532
    %1943 = vmatmul.mubr.bf16.gmra.mrb[0].mxu0 %v1531
    %v1944 = vpop.f32.mrb[0].mxu0
    %v1945 = vadd.f32 %v1572, %v1944
    %v1946 = vpop.f32.mrb[0].mxu0
    %v1947 = vpop.f32.mrb[0].mxu0
    %v1948 = vadd.f32 %v1572, %v1947
    %v1949 = vpop.f32.mrb[0].mxu0
    %1950 = vmatprep.mubr.bf16.mxu0 %v1534
    %1951 = vmatmul.mubr.bf16.gmra.mrb[0].mxu0 %v1533
    %v1952 = vpop.f32.mrb[0].mxu0
    %v1953 = vadd.f32 %v1572, %v1952
    %v1954 = vpop.f32.mrb[0].mxu0
    %v1955 = vpop.f32.mrb[0].mxu0
    %v1956 = vadd.f32 %v1572, %v1955
    %v1957 = vpop.f32.mrb[0].mxu0
    %1958 = vdwg.mxu0
    %v1959 = vxor.u32 %v1705, 2147483648
    %v1960 = vxor.u32 %v1708, 2147483648
    %v1961 = vxor.u32 %v1713, 2147483648
    %v1962 = vxor.u32 %v1716, 2147483648
    %v1963 = vxor.u32 %v1721, 2147483648
    %v1964 = vxor.u32 %v1724, 2147483648
    %v1965 = vxor.u32 %v1729, 2147483648
    %v1966 = vxor.u32 %v1732, 2147483648
    %v1967 = vxor.u32 %v1737, 2147483648
    %v1968 = vxor.u32 %v1740, 2147483648
    %v1969 = vxor.u32 %v1745, 2147483648
    %v1970 = vxor.u32 %v1748, 2147483648
    %v1971 = vxor.u32 %v1753, 2147483648
    %v1972 = vxor.u32 %v1756, 2147483648
    %v1973 = vxor.u32 %v1761, 2147483648
    %v1974 = vxor.u32 %v1764, 2147483648
    %v1975 = vxor.u32 %v1769, 2147483648
    %v1976 = vxor.u32 %v1772, 2147483648
    %v1977 = vxor.u32 %v1777, 2147483648
    %v1978 = vxor.u32 %v1780, 2147483648
    %v1979 = vxor.u32 %v1785, 2147483648
    %v1980 = vxor.u32 %v1788, 2147483648
    %v1981 = vxor.u32 %v1793, 2147483648
    %v1982 = vxor.u32 %v1796, 2147483648
    %v1983 = vxor.u32 %v1801, 2147483648
    %v1984 = vxor.u32 %v1804, 2147483648
    %v1985 = vxor.u32 %v1809, 2147483648
    %v1986 = vxor.u32 %v1812, 2147483648
    %v1987 = vxor.u32 %v1817, 2147483648
    %v1988 = vxor.u32 %v1820, 2147483648
    %v1989 = vxor.u32 %v1825, 2147483648
    %v1990 = vxor.u32 %v1828, 2147483648
    %v1991 = vxor.u32 %v1833, 2147483648
    %v1992 = vxor.u32 %v1836, 2147483648
    %v1993 = vxor.u32 %v1841, 2147483648
    %v1994 = vxor.u32 %v1844, 2147483648
    %v1995 = vxor.u32 %v1849, 2147483648
    %v1996 = vxor.u32 %v1852, 2147483648
    %v1997 = vxor.u32 %v1857, 2147483648
    %v1998 = vxor.u32 %v1860, 2147483648
    %v1999 = vxor.u32 %v1865, 2147483648
    %v2000 = vxor.u32 %v1868, 2147483648
    %v2001 = vxor.u32 %v1873, 2147483648
    %v2002 = vxor.u32 %v1876, 2147483648
    %v2003 = vxor.u32 %v1881, 2147483648
    %v2004 = vxor.u32 %v1884, 2147483648
    %v2005 = vxor.u32 %v1889, 2147483648
    %v2006 = vxor.u32 %v1892, 2147483648
    %v2007 = vxor.u32 %v1897, 2147483648
    %v2008 = vxor.u32 %v1900, 2147483648
    %v2009 = vxor.u32 %v1905, 2147483648
    %v2010 = vxor.u32 %v1908, 2147483648
    %v2011 = vxor.u32 %v1913, 2147483648
    %v2012 = vxor.u32 %v1916, 2147483648
    %v2013 = vxor.u32 %v1921, 2147483648
    %v2014 = vxor.u32 %v1924, 2147483648
    %v2015 = vxor.u32 %v1929, 2147483648
    %v2016 = vxor.u32 %v1932, 2147483648
    %v2017 = vxor.u32 %v1937, 2147483648
    %v2018 = vxor.u32 %v1940, 2147483648
    %v2019 = vxor.u32 %v1945, 2147483648
    %v2020 = vxor.u32 %v1948, 2147483648
    %v2021 = vxor.u32 %v1953, 2147483648
    %v2022 = vxor.u32 %v1956, 2147483648
    %v2023 = vmul.f32 %v1959, 1.442695
    %v2024 = vpow.pop %v2023
    %v2025 = vmul.f32 %v1960, 1.442695
    %v2026 = vpow.pop %v2025
    %v2027 = vmul.f32 %v1961, 1.442695
    %v2028 = vpow.pop %v2027
    %v2029 = vmul.f32 %v1962, 1.442695
    %v2030 = vpow.pop %v2029
    %v2031 = vmul.f32 %v1963, 1.442695
    %v2032 = vpow.pop %v2031
    %v2033 = vmul.f32 %v1964, 1.442695
    %v2034 = vpow.pop %v2033
    %v2035 = vmul.f32 %v1965, 1.442695
    %v2036 = vpow.pop %v2035
    %v2037 = vmul.f32 %v1966, 1.442695
    %v2038 = vpow.pop %v2037
    %v2039 = vmul.f32 %v1967, 1.442695
    %v2040 = vpow.pop %v2039
    %v2041 = vmul.f32 %v1968, 1.442695
    %v2042 = vpow.pop %v2041
    %v2043 = vmul.f32 %v1969, 1.442695
    %v2044 = vpow.pop %v2043
    %v2045 = vmul.f32 %v1970, 1.442695
    %v2046 = vpow.pop %v2045
    %v2047 = vmul.f32 %v1971, 1.442695
    %v2048 = vpow.pop %v2047
    %v2049 = vmul.f32 %v1972, 1.442695
    %v2050 = vpow.pop %v2049
    %v2051 = vmul.f32 %v1973, 1.442695
    %v2052 = vpow.pop %v2051
    %v2053 = vmul.f32 %v1974, 1.442695
    %v2054 = vpow.pop %v2053
    %v2055 = vmul.f32 %v1975, 1.442695
    %v2056 = vpow.pop %v2055
    %v2057 = vmul.f32 %v1976, 1.442695
    %v2058 = vpow.pop %v2057
    %v2059 = vmul.f32 %v1977, 1.442695
    %v2060 = vpow.pop %v2059
    %v2061 = vmul.f32 %v1978, 1.442695
    %v2062 = vpow.pop %v2061
    %v2063 = vmul.f32 %v1979, 1.442695
    %v2064 = vpow.pop %v2063
    %v2065 = vmul.f32 %v1980, 1.442695
    %v2066 = vpow.pop %v2065
    %v2067 = vmul.f32 %v1981, 1.442695
    %v2068 = vpow.pop %v2067
    %v2069 = vmul.f32 %v1982, 1.442695
    %v2070 = vpow.pop %v2069
    %v2071 = vmul.f32 %v1983, 1.442695
    %v2072 = vpow.pop %v2071
    %v2073 = vmul.f32 %v1984, 1.442695
    %v2074 = vpow.pop %v2073
    %v2075 = vmul.f32 %v1985, 1.442695
    %v2076 = vpow.pop %v2075
    %v2077 = vmul.f32 %v1986, 1.442695
    %v2078 = vpow.pop %v2077
    %v2079 = vmul.f32 %v1987, 1.442695
    %v2080 = vpow.pop %v2079
    %v2081 = vmul.f32 %v1988, 1.442695
    %v2082 = vpow.pop %v2081
    %v2083 = vmul.f32 %v1989, 1.442695
    %v2084 = vpow.pop %v2083
    %v2085 = vmul.f32 %v1990, 1.442695
    %v2086 = vpow.pop %v2085
    %v2087 = vmul.f32 %v1991, 1.442695
    %v2088 = vpow.pop %v2087
    %v2089 = vmul.f32 %v1992, 1.442695
    %v2090 = vpow.pop %v2089
    %v2091 = vmul.f32 %v1993, 1.442695
    %v2092 = vpow.pop %v2091
    %v2093 = vmul.f32 %v1994, 1.442695
    %v2094 = vpow.pop %v2093
    %v2095 = vmul.f32 %v1995, 1.442695
    %v2096 = vpow.pop %v2095
    %v2097 = vmul.f32 %v1996, 1.442695
    %v2098 = vpow.pop %v2097
    %v2099 = vmul.f32 %v1997, 1.442695
    %v2100 = vpow.pop %v2099
    %v2101 = vmul.f32 %v1998, 1.442695
    %v2102 = vpow.pop %v2101
    %v2103 = vmul.f32 %v1999, 1.442695
    %v2104 = vpow.pop %v2103
    %v2105 = vmul.f32 %v2000, 1.442695
    %v2106 = vpow.pop %v2105
    %v2107 = vmul.f32 %v2001, 1.442695
    %v2108 = vpow.pop %v2107
    %v2109 = vmul.f32 %v2002, 1.442695
    %v2110 = vpow.pop %v2109
    %v2111 = vmul.f32 %v2003, 1.442695
    %v2112 = vpow.pop %v2111
    %v2113 = vmul.f32 %v2004, 1.442695
    %v2114 = vpow.pop %v2113
    %v2115 = vmul.f32 %v2005, 1.442695
    %v2116 = vpow.pop %v2115
    %v2117 = vmul.f32 %v2006, 1.442695
    %v2118 = vpow.pop %v2117
    %v2119 = vmul.f32 %v2007, 1.442695
    %v2120 = vpow.pop %v2119
    %v2121 = vmul.f32 %v2008, 1.442695
    %v2122 = vpow.pop %v2121
    %v2123 = vmul.f32 %v2009, 1.442695
    %v2124 = vpow.pop %v2123
    %v2125 = vmul.f32 %v2010, 1.442695
    %v2126 = vpow.pop %v2125
    %v2127 = vmul.f32 %v2011, 1.442695
    %v2128 = vpow.pop %v2127
    %v2129 = vmul.f32 %v2012, 1.442695
    %v2130 = vpow.pop %v2129
    %v2131 = vmul.f32 %v2013, 1.442695
    %v2132 = vpow.pop %v2131
    %v2133 = vmul.f32 %v2014, 1.442695
    %v2134 = vpow.pop %v2133
    %v2135 = vmul.f32 %v2015, 1.442695
    %v2136 = vpow.pop %v2135
    %v2137 = vmul.f32 %v2016, 1.442695
    %v2138 = vpow.pop %v2137
    %v2139 = vmul.f32 %v2017, 1.442695
    %v2140 = vpow.pop %v2139
    %v2141 = vmul.f32 %v2018, 1.442695
    %v2142 = vpow.pop %v2141
    %v2143 = vmul.f32 %v2019, 1.442695
    %v2144 = vpow.pop %v2143
    %v2145 = vmul.f32 %v2020, 1.442695
    %v2146 = vpow.pop %v2145
    %v2147 = vmul.f32 %v2021, 1.442695
    %v2148 = vpow.pop %v2147
    %v2149 = vmul.f32 %v2022, 1.442695
    %v2150 = vpow.pop %v2149
    %v2151 = vadd.f32 %v2024, 1.0
    %v2152 = vadd.f32 %v2026, 1.0
    %v2153 = vadd.f32 %v2028, 1.0
    %v2154 = vadd.f32 %v2030, 1.0
    %v2155 = vadd.f32 %v2032, 1.0
    %v2156 = vadd.f32 %v2034, 1.0
    %v2157 = vadd.f32 %v2036, 1.0
    %v2158 = vadd.f32 %v2038, 1.0
    %v2159 = vadd.f32 %v2040, 1.0
    %v2160 = vadd.f32 %v2042, 1.0
    %v2161 = vadd.f32 %v2044, 1.0
    %v2162 = vadd.f32 %v2046, 1.0
    %v2163 = vadd.f32 %v2048, 1.0
    %v2164 = vadd.f32 %v2050, 1.0
    %v2165 = vadd.f32 %v2052, 1.0
    %v2166 = vadd.f32 %v2054, 1.0
    %v2167 = vadd.f32 %v2056, 1.0
    %v2168 = vadd.f32 %v2058, 1.0
    %v2169 = vadd.f32 %v2060, 1.0
    %v2170 = vadd.f32 %v2062, 1.0
    %v2171 = vadd.f32 %v2064, 1.0
    %v2172 = vadd.f32 %v2066, 1.0
    %v2173 = vadd.f32 %v2068, 1.0
    %v2174 = vadd.f32 %v2070, 1.0
    %v2175 = vadd.f32 %v2072, 1.0
    %v2176 = vadd.f32 %v2074, 1.0
    %v2177 = vadd.f32 %v2076, 1.0
    %v2178 = vadd.f32 %v2078, 1.0
    %v2179 = vadd.f32 %v2080, 1.0
    %v2180 = vadd.f32 %v2082, 1.0
    %v2181 = vadd.f32 %v2084, 1.0
    %v2182 = vadd.f32 %v2086, 1.0
    %v2183 = vadd.f32 %v2088, 1.0
    %v2184 = vadd.f32 %v2090, 1.0
    %v2185 = vadd.f32 %v2092, 1.0
    %v2186 = vadd.f32 %v2094, 1.0
    %v2187 = vadd.f32 %v2096, 1.0
    %v2188 = vadd.f32 %v2098, 1.0
    %v2189 = vadd.f32 %v2100, 1.0
    %v2190 = vadd.f32 %v2102, 1.0
    %v2191 = vadd.f32 %v2104, 1.0
    %v2192 = vadd.f32 %v2106, 1.0
    %v2193 = vadd.f32 %v2108, 1.0
    %v2194 = vadd.f32 %v2110, 1.0
    %v2195 = vadd.f32 %v2112, 1.0
    %v2196 = vadd.f32 %v2114, 1.0
    %v2197 = vadd.f32 %v2116, 1.0
    %v2198 = vadd.f32 %v2118, 1.0
    %v2199 = vadd.f32 %v2120, 1.0
    %v2200 = vadd.f32 %v2122, 1.0
    %v2201 = vadd.f32 %v2124, 1.0
    %v2202 = vadd.f32 %v2126, 1.0
    %v2203 = vadd.f32 %v2128, 1.0
    %v2204 = vadd.f32 %v2130, 1.0
    %v2205 = vadd.f32 %v2132, 1.0
    %v2206 = vadd.f32 %v2134, 1.0
    %v2207 = vadd.f32 %v2136, 1.0
    %v2208 = vadd.f32 %v2138, 1.0
    %v2209 = vadd.f32 %v2140, 1.0
    %v2210 = vadd.f32 %v2142, 1.0
    %v2211 = vadd.f32 %v2144, 1.0
    %v2212 = vadd.f32 %v2146, 1.0
    %v2213 = vadd.f32 %v2148, 1.0
    %v2214 = vadd.f32 %v2150, 1.0
    %v2215 = vrcp.pop %v2151
    %v2216 = vmul.f32 1.0, %v2215
    %v2217 = vrcp.pop %v2152
    %v2218 = vmul.f32 1.0, %v2217
    %v2219 = vrcp.pop %v2153
    %v2220 = vmul.f32 1.0, %v2219
    %v2221 = vrcp.pop %v2154
    %v2222 = vmul.f32 1.0, %v2221
    %v2223 = vrcp.pop %v2155
    %v2224 = vmul.f32 1.0, %v2223
    %v2225 = vrcp.pop %v2156
    %v2226 = vmul.f32 1.0, %v2225
    %v2227 = vrcp.pop %v2157
    %v2228 = vmul.f32 1.0, %v2227
    %v2229 = vrcp.pop %v2158
    %v2230 = vmul.f32 1.0, %v2229
    %v2231 = vrcp.pop %v2159
    %v2232 = vmul.f32 1.0, %v2231
    %v2233 = vrcp.pop %v2160
    %v2234 = vmul.f32 1.0, %v2233
    %v2235 = vrcp.pop %v2161
    %v2236 = vmul.f32 1.0, %v2235
    %v2237 = vrcp.pop %v2162
    %v2238 = vmul.f32 1.0, %v2237
    %v2239 = vrcp.pop %v2163
    %v2240 = vmul.f32 1.0, %v2239
    %v2241 = vrcp.pop %v2164
    %v2242 = vmul.f32 1.0, %v2241
    %v2243 = vrcp.pop %v2165
    %v2244 = vmul.f32 1.0, %v2243
    %v2245 = vrcp.pop %v2166
    %v2246 = vmul.f32 1.0, %v2245
    %v2247 = vrcp.pop %v2167
    %v2248 = vmul.f32 1.0, %v2247
    %v2249 = vrcp.pop %v2168
    %v2250 = vmul.f32 1.0, %v2249
    %v2251 = vrcp.pop %v2169
    %v2252 = vmul.f32 1.0, %v2251
    %v2253 = vrcp.pop %v2170
    %v2254 = vmul.f32 1.0, %v2253
    %v2255 = vrcp.pop %v2171
    %v2256 = vmul.f32 1.0, %v2255
    %v2257 = vrcp.pop %v2172
    %v2258 = vmul.f32 1.0, %v2257
    %v2259 = vrcp.pop %v2173
    %v2260 = vmul.f32 1.0, %v2259
    %v2261 = vrcp.pop %v2174
    %v2262 = vmul.f32 1.0, %v2261
    %v2263 = vrcp.pop %v2175
    %v2264 = vmul.f32 1.0, %v2263
    %v2265 = vrcp.pop %v2176
    %v2266 = vmul.f32 1.0, %v2265
    %v2267 = vrcp.pop %v2177
    %v2268 = vmul.f32 1.0, %v2267
    %v2269 = vrcp.pop %v2178
    %v2270 = vmul.f32 1.0, %v2269
    %v2271 = vrcp.pop %v2179
    %v2272 = vmul.f32 1.0, %v2271
    %v2273 = vrcp.pop %v2180
    %v2274 = vmul.f32 1.0, %v2273
    %v2275 = vrcp.pop %v2181
    %v2276 = vmul.f32 1.0, %v2275
    %v2277 = vrcp.pop %v2182
    %v2278 = vmul.f32 1.0, %v2277
    %v2279 = vrcp.pop %v2183
    %v2280 = vmul.f32 1.0, %v2279
    %v2281 = vrcp.pop %v2184
    %v2282 = vmul.f32 1.0, %v2281
    %v2283 = vrcp.pop %v2185
    %v2284 = vmul.f32 1.0, %v2283
    %v2285 = vrcp.pop %v2186
    %v2286 = vmul.f32 1.0, %v2285
    %v2287 = vrcp.pop %v2187
    %v2288 = vmul.f32 1.0, %v2287
    %v2289 = vrcp.pop %v2188
    %v2290 = vmul.f32 1.0, %v2289
    %v2291 = vrcp.pop %v2189
    %v2292 = vmul.f32 1.0, %v2291
    %v2293 = vrcp.pop %v2190
    %v2294 = vmul.f32 1.0, %v2293
    %v2295 = vrcp.pop %v2191
    %v2296 = vmul.f32 1.0, %v2295
    %v2297 = vrcp.pop %v2192
    %v2298 = vmul.f32 1.0, %v2297
    %v2299 = vrcp.pop %v2193
    %v2300 = vmul.f32 1.0, %v2299
    %v2301 = vrcp.pop %v2194
    %v2302 = vmul.f32 1.0, %v2301
    %v2303 = vrcp.pop %v2195
    %v2304 = vmul.f32 1.0, %v2303
    %v2305 = vrcp.pop %v2196
    %v2306 = vmul.f32 1.0, %v2305
    %v2307 = vrcp.pop %v2197
    %v2308 = vmul.f32 1.0, %v2307
    %v2309 = vrcp.pop %v2198
    %v2310 = vmul.f32 1.0, %v2309
    %v2311 = vrcp.pop %v2199
    %v2312 = vmul.f32 1.0, %v2311
    %v2313 = vrcp.pop %v2200
    %v2314 = vmul.f32 1.0, %v2313
    %v2315 = vrcp.pop %v2201
    %v2316 = vmul.f32 1.0, %v2315
    %v2317 = vrcp.pop %v2202
    %v2318 = vmul.f32 1.0, %v2317
    %v2319 = vrcp.pop %v2203
    %v2320 = vmul.f32 1.0, %v2319
    %v2321 = vrcp.pop %v2204
    %v2322 = vmul.f32 1.0, %v2321
    %v2323 = vrcp.pop %v2205
    %v2324 = vmul.f32 1.0, %v2323
    %v2325 = vrcp.pop %v2206
    %v2326 = vmul.f32 1.0, %v2325
    %v2327 = vrcp.pop %v2207
    %v2328 = vmul.f32 1.0, %v2327
    %v2329 = vrcp.pop %v2208
    %v2330 = vmul.f32 1.0, %v2329
    %v2331 = vrcp.pop %v2209
    %v2332 = vmul.f32 1.0, %v2331
    %v2333 = vrcp.pop %v2210
    %v2334 = vmul.f32 1.0, %v2333
    %v2335 = vrcp.pop %v2211
    %v2336 = vmul.f32 1.0, %v2335
    %v2337 = vrcp.pop %v2212
    %v2338 = vmul.f32 1.0, %v2337
    %v2339 = vrcp.pop %v2213
    %v2340 = vmul.f32 1.0, %v2339
    %v2341 = vrcp.pop %v2214
    %v2342 = vmul.f32 1.0, %v2341
    %vm2343 = vcmask 130048
    %2344 = vst.msk [vmem:[%s5] sm:$0xff] %vm2343, %v2216
    %2345 = vst.msk [vmem:[%s5 + $0x8] sm:$0xff] %vm2343, %v2218
    %2346 = vst.msk [vmem:[%s5 + $0x10] sm:$0xff] %vm2343, %v2220
    %2347 = vst.msk [vmem:[%s5 + $0x18] sm:$0xff] %vm2343, %v2222
    %2348 = vst.msk [vmem:[%s5 + $0x20] sm:$0xff] %vm2343, %v2224
    %2349 = vst.msk [vmem:[%s5 + $0x28] sm:$0xff] %vm2343, %v2226
    %2350 = vst.msk [vmem:[%s5 + $0x30] sm:$0xff] %vm2343, %v2228
    %2351 = vst.msk [vmem:[%s5 + $0x38] sm:$0xff] %vm2343, %v2230
    %2352 = vst.msk [vmem:[%s5 + $0x40] sm:$0xff] %vm2343, %v2232
    %2353 = vst.msk [vmem:[%s5 + $0x48] sm:$0xff] %vm2343, %v2234
    %2354 = vst.msk [vmem:[%s5 + $0x50] sm:$0xff] %vm2343, %v2236
    %2355 = vst.msk [vmem:[%s5 + $0x58] sm:$0xff] %vm2343, %v2238
    %2356 = vst.msk [vmem:[%s5 + $0x60] sm:$0xff] %vm2343, %v2240
    %2357 = vst.msk [vmem:[%s5 + $0x68] sm:$0xff] %vm2343, %v2242
    %2358 = vst.msk [vmem:[%s5 + $0x70] sm:$0xff] %vm2343, %v2244
    %2359 = vst.msk [vmem:[%s5 + $0x78] sm:$0xff] %vm2343, %v2246
    %2360 = vst.msk [vmem:[%s5 + $0x80] sm:$0xff] %vm2343, %v2248
    %2361 = vst.msk [vmem:[%s5 + $0x88] sm:$0xff] %vm2343, %v2250
    %2362 = vst.msk [vmem:[%s5 + $0x90] sm:$0xff] %vm2343, %v2252
    %2363 = vst.msk [vmem:[%s5 + $0x98] sm:$0xff] %vm2343, %v2254
    %2364 = vst.msk [vmem:[%s5 + $0xa0] sm:$0xff] %vm2343, %v2256
    %2365 = vst.msk [vmem:[%s5 + $0xa8] sm:$0xff] %vm2343, %v2258
    %2366 = vst.msk [vmem:[%s5 + $0xb0] sm:$0xff] %vm2343, %v2260
    %2367 = vst.msk [vmem:[%s5 + $0xb8] sm:$0xff] %vm2343, %v2262
    %2368 = vst.msk [vmem:[%s5 + $0xc0] sm:$0xff] %vm2343, %v2264
    %2369 = vst.msk [vmem:[%s5 + $0xc8] sm:$0xff] %vm2343, %v2266
    %2370 = vst.msk [vmem:[%s5 + $0xd0] sm:$0xff] %vm2343, %v2268
    %2371 = vst.msk [vmem:[%s5 + $0xd8] sm:$0xff] %vm2343, %v2270
    %2372 = vst.msk [vmem:[%s5 + $0xe0] sm:$0xff] %vm2343, %v2272
    %2373 = vst.msk [vmem:[%s5 + $0xe8] sm:$0xff] %vm2343, %v2274
    %2374 = vst.msk [vmem:[%s5 + $0xf0] sm:$0xff] %vm2343, %v2276
    %2375 = vst.msk [vmem:[%s5 + $0xf8] sm:$0xff] %vm2343, %v2278
    %2376 = vst.msk [vmem:[%s5 + $0x100] sm:$0xff] %vm2343, %v2280
    %2377 = vst.msk [vmem:[%s5 + $0x108] sm:$0xff] %vm2343, %v2282
    %2378 = vst.msk [vmem:[%s5 + $0x110] sm:$0xff] %vm2343, %v2284
    %2379 = vst.msk [vmem:[%s5 + $0x118] sm:$0xff] %vm2343, %v2286
    %2380 = vst.msk [vmem:[%s5 + $0x120] sm:$0xff] %vm2343, %v2288
    %2381 = vst.msk [vmem:[%s5 + $0x128] sm:$0xff] %vm2343, %v2290
    %2382 = vst.msk [vmem:[%s5 + $0x130] sm:$0xff] %vm2343, %v2292
    %2383 = vst.msk [vmem:[%s5 + $0x138] sm:$0xff] %vm2343, %v2294
    %2384 = vst.msk [vmem:[%s5 + $0x140] sm:$0xff] %vm2343, %v2296
    %2385 = vst.msk [vmem:[%s5 + $0x148] sm:$0xff] %vm2343, %v2298
    %2386 = vst.msk [vmem:[%s5 + $0x150] sm:$0xff] %vm2343, %v2300
    %2387 = vst.msk [vmem:[%s5 + $0x158] sm:$0xff] %vm2343, %v2302
    %2388 = vst.msk [vmem:[%s5 + $0x160] sm:$0xff] %vm2343, %v2304
    %2389 = vst.msk [vmem:[%s5 + $0x168] sm:$0xff] %vm2343, %v2306
    %2390 = vst.msk [vmem:[%s5 + $0x170] sm:$0xff] %vm2343, %v2308
    %2391 = vst.msk [vmem:[%s5 + $0x178] sm:$0xff] %vm2343, %v2310
    %2392 = vst.msk [vmem:[%s5 + $0x180] sm:$0xff] %vm2343, %v2312
    %2393 = vst.msk [vmem:[%s5 + $0x188] sm:$0xff] %vm2343, %v2314
    %2394 = vst.msk [vmem:[%s5 + $0x190] sm:$0xff] %vm2343, %v2316
    %2395 = vst.msk [vmem:[%s5 + $0x198] sm:$0xff] %vm2343, %v2318
    %2396 = vst.msk [vmem:[%s5 + $0x1a0] sm:$0xff] %vm2343, %v2320
    %2397 = vst.msk [vmem:[%s5 + $0x1a8] sm:$0xff] %vm2343, %v2322
    %2398 = vst.msk [vmem:[%s5 + $0x1b0] sm:$0xff] %vm2343, %v2324
    %2399 = vst.msk [vmem:[%s5 + $0x1b8] sm:$0xff] %vm2343, %v2326
    %2400 = vst.msk [vmem:[%s5 + $0x1c0] sm:$0xff] %vm2343, %v2328
    %2401 = vst.msk [vmem:[%s5 + $0x1c8] sm:$0xff] %vm2343, %v2330
    %2402 = vst.msk [vmem:[%s5 + $0x1d0] sm:$0xff] %vm2343, %v2332
    %2403 = vst.msk [vmem:[%s5 + $0x1d8] sm:$0xff] %vm2343, %v2334
    %2404 = vst.msk [vmem:[%s5 + $0x1e0] sm:$0xff] %vm2343, %v2336
    %2405 = vst.msk [vmem:[%s5 + $0x1e8] sm:$0xff] %vm2343, %v2338
    %2406 = vst.msk [vmem:[%s5 + $0x1f0] sm:$0xff] %vm2343, %v2340
    %2407 = vst.msk [vmem:[%s5 + $0x1f8] sm:$0xff] %vm2343, %v2342
    // Predicated region
    $region30: #{mlp_forward.1} parent=1 // pred_check
      _
    $region31: #{mlp_forward.1} parent=1 // pred_check_branch
      %2409 = sbr.rel (0) target = $region33
    $region32: #{mlp_forward.1} parent=1 // pred_region
      _
    $region33: #{mlp_forward.1} parent=1 // pred_fallthru
      _
    // Predicated region
    $region34: #{mlp_forward.1} parent=1 // pred_check
      _
    $region35: #{mlp_forward.1} parent=1 // pred_check_branch
      %2411 = sbr.rel (0) target = $region37
    $region36: #{mlp_forward.1} parent=1 // pred_region
      _
    $region37: #{mlp_forward.1} parent=1 // pred_fallthru
      _
    %2412 = vsyncpa [#allocation3], 1
    %2413 = vsyncpa [#allocation5], 1

</llo_original>
